<compile_context>
chip_gen: v7x
topology: tpu7x:2x2x1
jax: 0.10.0
libtpu: 0.0.40
codegen_flags: <defaults>
</compile_context>

<pallas_src>
import functools
import math

import jax
import jax.numpy as jnp
from jax import lax
from jax.experimental import pallas as pl
from jax.experimental.pallas import tpu as pltpu


def to_2tuple(v):
    return v if isinstance(v, tuple) else (v, v)


LANES = 128


def _round_up(x, m):
    return ((x + m - 1) // m) * m


def _pick_tile_m(M, target=512):
    """Large M tile for pipelining efficiency, but aim for >=2 grid steps so
    the v7x megacore (2 TensorCores) has work on both cores."""
    if M >= 2 * target:
        return target
    tm = max(128, _round_up(max(1, (M + 1) // 2), 128))
    return min(tm, target)


# --------------------------------------------------------------------------
# Pallas kernels
# --------------------------------------------------------------------------
def _matmul_bias_kernel(x_ref, w_ref, b_ref, o_ref):
    acc = jnp.dot(x_ref[...], w_ref[...], preferred_element_type=jnp.float32)
    o_ref[...] = (acc + b_ref[...]).astype(o_ref.dtype)


def _matmul_bias_softmax_kernel(x_ref, w_ref, b_ref, o_ref, *, sm_lo, sm_hi):
    """matmul + bias, then softmax over output columns [sm_lo, sm_hi)
    (the K mask-logit channels) fused into the epilogue.  exp goes to the EUP
    slot and the lane reduce to the XLU, both free next to the MXU."""
    acc = jnp.dot(x_ref[...], w_ref[...], preferred_element_type=jnp.float32)
    acc = acc + b_ref[...]
    col = lax.broadcasted_iota(jnp.int32, acc.shape, 1)
    in_sm = (col >= sm_lo) & (col < sm_hi)
    m = jnp.max(jnp.where(in_sm, acc, -jnp.inf), axis=-1, keepdims=True)
    e = jnp.where(in_sm, jnp.exp(acc - m), 0.0)
    s = jnp.sum(e, axis=-1, keepdims=True)
    o_ref[...] = jnp.where(in_sm, e / s, acc).astype(o_ref.dtype)


def _pallas_matmul(cols, w_mat, bias, *, softmax_cols=None,
                   out_dtype=jnp.float32, tile_target=512):
    """cols [M, Kd] @ w_mat [Kd, Nout] + bias [Nout] -> [M, Nout].

    Nout is zero-padded to a multiple of 128 so the output block is lane-dense
    (unmasked full-width stores).  MXU inputs are bf16, accumulation f32.
    Optionally a softmax over output columns softmax_cols=(lo, hi) is fused
    into the epilogue (used for the DCNv2 mask channels)."""
    M, Kd = cols.shape
    Nout = w_mat.shape[1]
    Np = _round_up(Nout, LANES)
    tm = _pick_tile_m(M, tile_target)
    Mp = _round_up(M, tm)

    cols_b = cols.astype(jnp.bfloat16)
    if Mp != M:
        cols_b = jnp.pad(cols_b, ((0, Mp - M), (0, 0)))
    w_b = jnp.pad(w_mat, ((0, 0), (0, Np - Nout))).astype(jnp.bfloat16)
    b_p = jnp.pad(bias, (0, Np - Nout)).astype(jnp.float32).reshape(1, Np)

    if softmax_cols is None:
        kernel = _matmul_bias_kernel
    else:
        kernel = functools.partial(_matmul_bias_softmax_kernel,
                                   sm_lo=softmax_cols[0],
                                   sm_hi=softmax_cols[1])

    out = pl.pallas_call(
        kernel,
        out_shape=jax.ShapeDtypeStruct((Mp, Np), out_dtype),
        grid_spec=pltpu.PrefetchScalarGridSpec(
            num_scalar_prefetch=0,
            grid=(Mp // tm,),
            in_specs=[
                pl.BlockSpec((tm, Kd), lambda i: (i, 0)),
                pl.BlockSpec((Kd, Np), lambda i: (0, 0)),   # resident weight
                pl.BlockSpec((1, Np), lambda i: (0, 0)),    # resident bias
            ],
            out_specs=pl.BlockSpec((tm, Np), lambda i: (i, 0)),
        ),
        compiler_params=pltpu.CompilerParams(
            dimension_semantics=("parallel",)),
    )(cols_b, w_b, b_p)
    return out[:M, :Nout]


# --------------------------------------------------------------------------
# Glue: im2col and deformable (bilinear) im2col in channel-last layout
# --------------------------------------------------------------------------
def _im2col_nhwc(x_nhwc, kh, kw, stride, pad):
    """Plain im2col, channel-last.  Columns [M, K*Cin], tap-major/cin-minor
    (matches weight.transpose(2,3,1,0).reshape(K*Cin, -1))."""
    # TODO(synk): the 9-tap column matrix is still materialized in HBM; a
    # further win is fusing the tap loop into the Pallas matmul grid (halo
    # BlockSpecs) or using lax.conv for this standard conv.
    N, H, W, Cin = x_nhwc.shape
    sh, sw = stride
    Ho = (H + 2 * pad - kh) // sh + 1
    Wo = (W + 2 * pad - kw) // sw + 1
    xp = jnp.pad(x_nhwc, ((0, 0), (pad, pad), (pad, pad), (0, 0)))
    taps = []
    for i in range(kh):
        for j in range(kw):
            taps.append(xp[:, i:i + sh * (Ho - 1) + 1:sh,
                           j:j + sw * (Wo - 1) + 1:sw, :])
    patches = jnp.stack(taps, axis=3)                  # [N, Ho, Wo, K, Cin]
    cols = patches.reshape(N * Ho * Wo, kh * kw * Cin)
    return cols, Ho, Wo


def _deform_im2col_nhwc(x_nhwc, offset, mask, kh, kw, stride, pad, dil=1):
    """Modulated deformable im2col (torchvision deform_conv2d semantics),
    channel-last so the gathers are lane-dense and the columns need no
    transpose of the K*Cin-expanded tensor.

    offset: [N, Ho, Wo, 2K] interleaved (dy, dx) per tap (torchvision order).
    mask:   [N, Ho, Wo, K]  (already through the softmax nonlinearity).
    Returns columns [N*Ho*Wo, K*Cin] (tap-major, channel-minor).
    """
    # TODO(synk): the data-dependent bilinear gather stays in XLA (jnp.take);
    # a fully-Pallas version would need memory_space=pl.ANY on x plus manual
    # double-buffered DMA row gathers (P4 pattern).
    N, H, W, Cin = x_nhwc.shape
    K = kh * kw
    Ho, Wo = offset.shape[1], offset.shape[2]
    sh, sw = stride

    t = jnp.arange(K)
    ho = jnp.arange(Ho)
    wo = jnp.arange(Wo)
    base_y = (ho[:, None, None] * sh - pad + (t // kw)[None, None, :] * dil)
    base_x = (wo[None, :, None] * sw - pad + (t % kw)[None, None, :] * dil)
    off = offset.reshape(N, Ho, Wo, K, 2)
    py = base_y[None].astype(jnp.float32) + off[..., 0]        # [N, Ho, Wo, K]
    px = base_x[None].astype(jnp.float32) + off[..., 1]

    y0 = jnp.floor(py)
    x0 = jnp.floor(px)
    y1 = y0 + 1.0
    x1 = x0 + 1.0
    wy1 = py - y0
    wy0 = 1.0 - wy1
    wx1 = px - x0
    wx0 = 1.0 - wx1

    x_flat = x_nhwc.reshape(N, H * W, Cin)

    def gather_one(img, yy, xx):
        valid = (yy >= 0) & (yy <= H - 1) & (xx >= 0) & (xx <= W - 1)
        yi = jnp.clip(yy, 0, H - 1).astype(jnp.int32)
        xi = jnp.clip(xx, 0, W - 1).astype(jnp.int32)
        idx = (yi * W + xi).reshape(-1)
        v = jnp.take(img, idx, axis=0).reshape(Ho, Wo, K, Cin)
        return v * valid[..., None].astype(img.dtype)

    gather = jax.vmap(gather_one, in_axes=(0, 0, 0))
    v00 = gather(x_flat, y0, x0)
    v01 = gather(x_flat, y0, x1)
    v10 = gather(x_flat, y1, x0)
    v11 = gather(x_flat, y1, x1)

    # bilinear combine + mask modulation fused in a single elementwise pass
    val = ((wy0 * wx0)[..., None] * v00 + (wy0 * wx1)[..., None] * v01 +
           (wy1 * wx0)[..., None] * v10 + (wy1 * wx1)[..., None] * v11)
    val = val * mask[..., None]                         # [N, Ho, Wo, K, Cin]
    cols = val.reshape(N * Ho * Wo, K * Cin)
    return cols


# --------------------------------------------------------------------------
# DCNv2 module
# --------------------------------------------------------------------------
class DCNv2Pallas:
    def __init__(self, in_channels, out_channels, kernel_size=3, stride=1,
                 padding=1, *, key):
        self.in_channels = in_channels
        self.out_channels = out_channels
        self.stride = stride if isinstance(stride, tuple) else (stride, stride)
        self.padding = padding
        self.kernel_size = to_2tuple(kernel_size)
        kh, kw = self.kernel_size
        K = kh * kw

        # reset_parameters(): uniform(-stdv, stdv) weight, zero bias
        n = in_channels * K
        stdv = 1.0 / math.sqrt(n)
        self.weight = jax.random.uniform(
            key, (out_channels, in_channels, kh, kw),
            minval=-stdv, maxval=stdv, dtype=jnp.float32)
        self.bias = jnp.zeros((out_channels,), jnp.float32)

        # _init_weight(): conv_offset_mask weight & bias = 0
        self.offset_weight = jnp.zeros((3 * K, in_channels, kh, kw), jnp.float32)
        self.offset_bias = jnp.zeros((3 * K,), jnp.float32)

    def __call__(self, x):
        N, Cin, H, W = x.shape
        kh, kw = self.kernel_size
        K = kh * kw

        # internal layout: channel-last
        x_nhwc = jnp.transpose(x, (0, 2, 3, 1))

        # ---- conv_offset_mask (+ fused mask softmax over the K channels) ----
        cols_om, Ho, Wo = _im2col_nhwc(x_nhwc, kh, kw, self.stride, self.padding)
        w_om = self.offset_weight.transpose(2, 3, 1, 0).reshape(K * Cin, 3 * K)
        om = _pallas_matmul(cols_om, w_om, self.offset_bias,
                            softmax_cols=(2 * K, 3 * K))        # [M, 3K]
        om = om.reshape(N, Ho, Wo, 3 * K)

        o1 = om[..., :K]
        o2 = om[..., K:2 * K]
        mask = om[..., 2 * K:]                     # already softmaxed in-kernel
        offset = jnp.concatenate([o1, o2], axis=-1)          # [N, Ho, Wo, 2K]

        # ---- deformable conv: deformable im2col + Pallas matmul ----
        dcols = _deform_im2col_nhwc(x_nhwc, offset, mask, kh, kw,
                                    self.stride, self.padding)
        w_mat = self.weight.transpose(2, 3, 1, 0).reshape(K * Cin,
                                                          self.out_channels)
        out = _pallas_matmul(dcols, w_mat, self.bias)            # [M, Cout]
        out = out.reshape(N, Ho, Wo, self.out_channels).transpose(0, 3, 1, 2)
        return out


if __name__ == "__main__":
    key = jax.random.PRNGKey(0)
    k_x, k_w = jax.random.split(key)
    x = jax.random.normal(k_x, (2, 4, 16, 16), dtype=jnp.float32)
    module = DCNv2Pallas(in_channels=4, out_channels=8,
                         kernel_size=3, stride=1, padding=1, key=k_w)
    y = jax.jit(module.__call__)(x)
    jax.block_until_ready(y)
    assert y.shape == (2, 8, 16, 16), y.shape
    assert bool(jnp.all(jnp.isfinite(y)))

    # With the zero-initialized offset conv, offsets are 0 and the mask is a
    # uniform softmax (1/K), so DCNv2 reduces to a standard conv scaled by 1/K.
    K = 9
    ref = lax.conv_general_dilated(x, module.weight, window_strides=(1, 1),
                                   padding=[(1, 1), (1, 1)]) / K
    ref = ref + module.bias[None, :, None, None]
    assert bool(jnp.allclose(y, ref, rtol=3e-2, atol=3e-2)), \
        float(jnp.max(jnp.abs(y - ref)))
    print("KERNEL_OK")
</pallas_src>

<mosaic_0001>
module attributes {stable_mosaic.version = 11 : i64} {
  func.func @_matmul_bias_softmax_kernel(%arg0: i32, %arg1: memref<256x36xbf16, #tpu.memory_space<vmem>>, %arg2: memref<36x128xbf16, #tpu.memory_space<vmem>>, %arg3: memref<1x128xf32, #tpu.memory_space<vmem>>, %arg4: memref<256x128xf32, #tpu.memory_space<vmem>>) attributes {dimension_semantics = [#tpu.dimension_semantics<parallel>], iteration_bounds = array<i64: 2>, scalar_prefetch = 0 : i64, scratch_operands = 0 : i64, tpu.core_type = #tpu.core_type<tc>, window_params = [{transform_indices = @transform_0, window_bounds = array<i64: 256, 36>}, {pipeline_mode = #tpu.pipeline_mode<synchronous>, transform_indices = @transform_1, window_bounds = array<i64: 36, 128>}, {pipeline_mode = #tpu.pipeline_mode<synchronous>, transform_indices = @transform_2, window_bounds = array<i64: 1, 128>}, {transform_indices = @transform_3, window_bounds = array<i64: 256, 128>}]} {
    %c0 = arith.constant 0 : index
    %c0_0 = arith.constant 0 : index
    %0 = vector.load %arg1[%c0, %c0_0] : memref<256x36xbf16, #tpu.memory_space<vmem>>, vector<256x36xbf16>
    %c0_1 = arith.constant 0 : index
    %c0_2 = arith.constant 0 : index
    %1 = vector.load %arg2[%c0_1, %c0_2] : memref<36x128xbf16, #tpu.memory_space<vmem>>, vector<36x128xbf16>
    %cst = arith.constant dense<0.000000e+00> : vector<256x128xf32>
    %2 = tpu.matmul %0, %1, %cst {dimension_numbers = #tpu.dot_dimension_numbers<[1], [0], [0], [1], [0, 0, 1, 1], [], []>} : vector<256x36xbf16>, vector<36x128xbf16>, vector<256x128xf32> -> vector<256x128xf32>
    %c0_3 = arith.constant 0 : index
    %c0_4 = arith.constant 0 : index
    %3 = vector.load %arg3[%c0_3, %c0_4] : memref<1x128xf32, #tpu.memory_space<vmem>>, vector<1x128xf32>
    %4 = vector.broadcast %3 : vector<1x128xf32> to vector<256x128xf32>
    %5 = arith.addf %2, %4 : vector<256x128xf32>
    %6 = tpu.iota {dimensions = array<i32: 1>} : vector<256x128xi32>
    %c18_i32 = arith.constant 18 : i32
    %7 = vector.broadcast %c18_i32 : i32 to vector<256x128xi32>
    %8 = arith.cmpi sge, %6, %7 : vector<256x128xi32>
    %c27_i32 = arith.constant 27 : i32
    %9 = vector.broadcast %c27_i32 : i32 to vector<256x128xi32>
    %10 = arith.cmpi slt, %6, %9 : vector<256x128xi32>
    %11 = arith.andi %8, %10 : vector<256x128xi1>
    %cst_5 = arith.constant 0xFF800000 : f32
    %12 = vector.broadcast %cst_5 : f32 to vector<256x128xf32>
    %13 = arith.select %11, %5, %12 : vector<256x128xi1>, vector<256x128xf32>
    %cst_6 = arith.constant dense<0xFF800000> : vector<256xf32>
    %14 = vector.multi_reduction <maximumf>, %13, %cst_6 [1] : vector<256x128xf32> to vector<256xf32>
    %15 = vector.shape_cast %14 : vector<256xf32> to vector<256x1xf32>
    %16 = vector.broadcast %15 : vector<256x1xf32> to vector<256x128xf32>
    %17 = arith.subf %5, %16 : vector<256x128xf32>
    %18 = math.exp %17 : vector<256x128xf32>
    %cst_7 = arith.constant 0.000000e+00 : f32
    %19 = vector.broadcast %cst_7 : f32 to vector<256x128xf32>
    %20 = arith.select %11, %18, %19 : vector<256x128xi1>, vector<256x128xf32>
    %cst_8 = arith.constant dense<0.000000e+00> : vector<256xf32>
    %21 = vector.multi_reduction <add>, %20, %cst_8 [1] : vector<256x128xf32> to vector<256xf32>
    %22 = vector.shape_cast %21 : vector<256xf32> to vector<256x1xf32>
    %23 = vector.broadcast %22 : vector<256x1xf32> to vector<256x128xf32>
    %24 = arith.divf %20, %23 : vector<256x128xf32>
    %25 = arith.select %11, %24, %5 : vector<256x128xi1>, vector<256x128xf32>
    %c0_9 = arith.constant 0 : index
    %c0_10 = arith.constant 0 : index
    %26 = vector.load %arg4[%c0_9, %c0_10] : memref<256x128xf32, #tpu.memory_space<vmem>>, vector<256x128xf32>
    tpu.vector_store %arg4[%c0_9, %c0_10], %25 {strides = array<i32>} : memref<256x128xf32, #tpu.memory_space<vmem>>, vector<256x128xf32>,
    return
  }
  func.func @transform_0(%arg0: i32) -> (i32, i32) {
    %c0_i32 = arith.constant 0 : i32
    %c0_i32_0 = arith.constant 0 : i32
    return %arg0, %c0_i32 : i32, i32
  }
  func.func @transform_1(%arg0: i32) -> (i32, i32) {
    %c0_i32 = arith.constant 0 : i32
    %c0_i32_0 = arith.constant 0 : i32
    %c0_i32_1 = arith.constant 0 : i32
    return %c0_i32, %c0_i32_0 : i32, i32
  }
  func.func @transform_2(%arg0: i32) -> (i32, i32) {
    %c0_i32 = arith.constant 0 : i32
    %c0_i32_0 = arith.constant 0 : i32
    %c0_i32_1 = arith.constant 0 : i32
    return %c0_i32, %c0_i32_0 : i32, i32
  }
  func.func @transform_3(%arg0: i32) -> (i32, i32) {
    %c0_i32 = arith.constant 0 : i32
    %c0_i32_0 = arith.constant 0 : i32
    return %arg0, %c0_i32 : i32, i32
  }
}

module attributes {stable_mosaic.version = 11 : i64} {
  func.func @_matmul_bias_kernel(%arg0: i32, %arg1: memref<256x36xbf16, #tpu.memory_space<vmem>>, %arg2: memref<36x128xbf16, #tpu.memory_space<vmem>>, %arg3: memref<1x128xf32, #tpu.memory_space<vmem>>, %arg4: memref<256x128xf32, #tpu.memory_space<vmem>>) attributes {dimension_semantics = [#tpu.dimension_semantics<parallel>], iteration_bounds = array<i64: 2>, scalar_prefetch = 0 : i64, scratch_operands = 0 : i64, tpu.core_type = #tpu.core_type<tc>, window_params = [{transform_indices = @transform_0, window_bounds = array<i64: 256, 36>}, {pipeline_mode = #tpu.pipeline_mode<synchronous>, transform_indices = @transform_1, window_bounds = array<i64: 36, 128>}, {pipeline_mode = #tpu.pipeline_mode<synchronous>, transform_indices = @transform_2, window_bounds = array<i64: 1, 128>}, {transform_indices = @transform_3, window_bounds = array<i64: 256, 128>}]} {
    %c0 = arith.constant 0 : index
    %c0_0 = arith.constant 0 : index
    %0 = vector.load %arg1[%c0, %c0_0] : memref<256x36xbf16, #tpu.memory_space<vmem>>, vector<256x36xbf16>
    %c0_1 = arith.constant 0 : index
    %c0_2 = arith.constant 0 : index
    %1 = vector.load %arg2[%c0_1, %c0_2] : memref<36x128xbf16, #tpu.memory_space<vmem>>, vector<36x128xbf16>
    %cst = arith.constant dense<0.000000e+00> : vector<256x128xf32>
    %2 = tpu.matmul %0, %1, %cst {dimension_numbers = #tpu.dot_dimension_numbers<[1], [0], [0], [1], [0, 0, 1, 1], [], []>} : vector<256x36xbf16>, vector<36x128xbf16>, vector<256x128xf32> -> vector<256x128xf32>
    %c0_3 = arith.constant 0 : index
    %c0_4 = arith.constant 0 : index
    %3 = vector.load %arg3[%c0_3, %c0_4] : memref<1x128xf32, #tpu.memory_space<vmem>>, vector<1x128xf32>
    %4 = vector.broadcast %3 : vector<1x128xf32> to vector<256x128xf32>
    %5 = arith.addf %2, %4 : vector<256x128xf32>
    %c0_5 = arith.constant 0 : index
    %c0_6 = arith.constant 0 : index
    %6 = vector.load %arg4[%c0_5, %c0_6] : memref<256x128xf32, #tpu.memory_space<vmem>>, vector<256x128xf32>
    tpu.vector_store %arg4[%c0_5, %c0_6], %5 {strides = array<i32>} : memref<256x128xf32, #tpu.memory_space<vmem>>, vector<256x128xf32>,
    return
  }
  func.func @transform_0(%arg0: i32) -> (i32, i32) {
    %c0_i32 = arith.constant 0 : i32
    %c0_i32_0 = arith.constant 0 : i32
    return %arg0, %c0_i32 : i32, i32
  }
  func.func @transform_1(%arg0: i32) -> (i32, i32) {
    %c0_i32 = arith.constant 0 : i32
    %c0_i32_0 = arith.constant 0 : i32
    %c0_i32_1 = arith.constant 0 : i32
    return %c0_i32, %c0_i32_0 : i32, i32
  }
  func.func @transform_2(%arg0: i32) -> (i32, i32) {
    %c0_i32 = arith.constant 0 : i32
    %c0_i32_0 = arith.constant 0 : i32
    %c0_i32_1 = arith.constant 0 : i32
    return %c0_i32, %c0_i32_0 : i32, i32
  }
  func.func @transform_3(%arg0: i32) -> (i32, i32) {
    %c0_i32 = arith.constant 0 : i32
    %c0_i32_0 = arith.constant 0 : i32
    return %arg0, %c0_i32 : i32, i32
  }
}

</mosaic_0001>

<llo_original>
// kernel: a_call__.2
$region0: #{a_call__.2}
  #allocation0 [shape = 'u32[]', space=smem, size = 0x4, offset = 0x4, fixed_abs, tag = 'smem constant byte address 0x4 - core index']
  #allocation1 [shape = 'u32[144,128]{1,0:T(1,128)}', space=vmem, size = 0x12000, scoped, tag = 'internal scratch']
  %s0 = inlined_call_operand.vmem [shape: bf16[512,36], index: 0, kind: input, shape index: {}]
  %s1 = inlined_call_operand.vmem [shape: bf16[36,128], index: 1, kind: input, shape index: {}]
  %s2 = inlined_call_operand.vmem [shape: f32[1,128], index: 2, kind: input, shape index: {}]
  %s3 = inlined_call_operand.vmem [shape: f32[512,128], index: 3, kind: output, shape index: {}]
  %s4 = sld [smem:[#allocation0]]
  $region45: #{a_call__.2} parent=0
    _
  %s6 = ssub.s32 1, %s4
  %s7 = scalar_select 0, %s6, %s4
  loop: start=0, step=1, limit=4
  $region2: #{a_call__.2} parent=0 // loop_pre_header
    _
  $region3: #{a_call__.2} parent=0 // loop_header
    %s9 = sphi 0, %s13
    %p10 = scmp.ge.s32.totalorder %s9, 4
    %s19 = sphi 0, %s21
    %s22 = sphi 0, %s19
    %s23 = sphi 0, %s22
    %s39 = sphi 0, %s23
    %s43 = sphi 0, %s43
    %s45 = sphi 0, %s43
    %s46 = sphi 0, %s45
    %s60 = sphi 0, %s46
    %s64 = sphi 0, %s64
    %s66 = sphi 0, %s64
    %s67 = sphi 0, %s66
    %s81 = sphi 0, %s67
    %s87 = sphi 0, %s89
    %s90 = sphi 0, %s87
    %s91 = sphi 0, %s90
    %s107 = sphi 0, %s91
  $region4: #{a_call__.2} parent=0 // loop_header_branch
    %12 = sbr.rel (%p10) target = $region8
  $region5: #{a_call__.2} parent=0 // loop_body
    %s14 = ssub.s32 %s9, 1
    %s15 = ssub.s32 %s9, 2
    %s16 = sadd.s32 %s9, 1
    %s17 = ssub.s32 %s9, %s16
    %p18 = scmp.eq.s32.totalorder %s17, 0
    %s20 = sadd.s32 %s19, 1
    %s21 = scalar_select %p18, %s19, %s20
    %p24 = pneg %p18
    %p25 = scmp.eq.s32.totalorder %s9, 1
    %p26 = por %p24, %p25
    %p27 = scmp.ne.s32.totalorder %s19, %s22
    %p28 = scmp.eq.s32.totalorder %s9, 0
    %p29 = por %p27, %p28
    %p30 = scmp.ne.s32.totalorder %s19, %s22
    %p31 = scmp.eq.s32.totalorder %s14, 1
    %p32 = por %p30, %p31
    %p33 = scmp.ne.s32.totalorder %s22, %s23
    %p34 = scmp.eq.s32.totalorder %s14, 0
    %p35 = por %p33, %p34
    %p36 = scmp.ne.s32.totalorder %s22, %s23
    %p37 = scmp.eq.s32.totalorder %s15, 1
    %p38 = por %p36, %p37
    %p40 = scmp.ne.s32.totalorder %s23, %s39
    %p41 = scmp.eq.s32.totalorder %s15, 0
    %p42 = por %p40, %p41
    %s44 = sadd.s32 %s43, 1
    %p47 = scmp.eq.s32.totalorder %s9, 1
    %p48 = scmp.ne.s32.totalorder %s43, %s45
    %p49 = scmp.eq.s32.totalorder %s9, 0
    %p50 = por %p48, %p49
    %p51 = scmp.ne.s32.totalorder %s43, %s45
    %p52 = scmp.eq.s32.totalorder %s14, 1
    %p53 = por %p51, %p52
    %p54 = scmp.ne.s32.totalorder %s45, %s46
    %p55 = scmp.eq.s32.totalorder %s14, 0
    %p56 = por %p54, %p55
    %p57 = scmp.ne.s32.totalorder %s45, %s46
    %p58 = scmp.eq.s32.totalorder %s15, 1
    %p59 = por %p57, %p58
    %p61 = scmp.ne.s32.totalorder %s46, %s60
    %p62 = scmp.eq.s32.totalorder %s15, 0
    %p63 = por %p61, %p62
    %s65 = sadd.s32 %s64, 1
    %p68 = scmp.eq.s32.totalorder %s9, 1
    %p69 = scmp.ne.s32.totalorder %s64, %s66
    %p70 = scmp.eq.s32.totalorder %s9, 0
    %p71 = por %p69, %p70
    %p72 = scmp.ne.s32.totalorder %s64, %s66
    %p73 = scmp.eq.s32.totalorder %s14, 1
    %p74 = por %p72, %p73
    %p75 = scmp.ne.s32.totalorder %s66, %s67
    %p76 = scmp.eq.s32.totalorder %s14, 0
    %p77 = por %p75, %p76
    %p78 = scmp.ne.s32.totalorder %s66, %s67
    %p79 = scmp.eq.s32.totalorder %s15, 1
    %p80 = por %p78, %p79
    %p82 = scmp.ne.s32.totalorder %s67, %s81
    %p83 = scmp.eq.s32.totalorder %s15, 0
    %p84 = por %p82, %p83
    %s85 = ssub.s32 %s9, %s16
    %p86 = scmp.eq.s32.totalorder %s85, 0
    %s88 = sadd.s32 %s87, 1
    %s89 = scalar_select %p86, %s87, %s88
    %p92 = pneg %p86
    %p93 = scmp.eq.s32.totalorder %s9, 1
    %p94 = por %p92, %p93
    %p95 = scmp.ne.s32.totalorder %s87, %s90
    %p96 = scmp.eq.s32.totalorder %s9, 0
    %p97 = por %p95, %p96
    %p98 = scmp.ne.s32.totalorder %s87, %s90
    %p99 = scmp.eq.s32.totalorder %s14, 1
    %p100 = por %p98, %p99
    %p101 = scmp.ne.s32.totalorder %s90, %s91
    %p102 = scmp.eq.s32.totalorder %s14, 0
    %p103 = por %p101, %p102
    %p104 = scmp.ne.s32.totalorder %s90, %s91
    %p105 = scmp.eq.s32.totalorder %s15, 1
    %p106 = por %p104, %p105
    %p108 = scmp.ne.s32.totalorder %s91, %s107
    %p109 = scmp.eq.s32.totalorder %s15, 0
    %p110 = por %p108, %p109
    %p111 = scmp.le.s32.totalorder 1, %s9
    %p112 = scmp.lt.s32.totalorder %s9, 3
    %p113 = pnand %p111, %p112
    %p114 = pneg %p113
    // Predicated region
    $region9: #{a_call__.2} parent=5 // pred_check
      _
    $region10: #{a_call__.2} parent=5 // pred_check_branch
      %116 = sbr.rel (%p113) target = $region12
    $region11: #{a_call__.2} parent=5 // pred_region
      %s117 = ssub.s32 %s9, 1
      // Predicated region
      $region13: #{a_call__.2} parent=11 // pred_check
        %p118 = pneg %p56
      $region14: #{a_call__.2} parent=11 // pred_check_branch
        %120 = sbr.rel (%p118) target = $region16
      $region15: #{a_call__.2} parent=11 // pred_region
        _
      $region16: #{a_call__.2} parent=11 // pred_fallthru
        _
      // Predicated region
      $region17: #{a_call__.2} parent=11 // pred_check
        %p121 = pneg %p77
      $region18: #{a_call__.2} parent=11 // pred_check_branch
        %123 = sbr.rel (%p121) target = $region20
      $region19: #{a_call__.2} parent=11 // pred_region
        _
      $region20: #{a_call__.2} parent=11 // pred_fallthru
        _
    $region12: #{a_call__.2} parent=5 // pred_fallthru
      _
    %p124 = scmp.lt.s32.totalorder %s9, 2
    // Predicated region
    $region21: #{a_call__.2} parent=5 // pred_check
      %p125 = pneg %p124
    $region22: #{a_call__.2} parent=5 // pred_check_branch
      %127 = sbr.rel (%p125) target = $region24
    $region23: #{a_call__.2} parent=5 // pred_region
      // Predicated region
      $region25: #{a_call__.2} parent=23 // pred_check
        %p128 = pneg %p29
      $region26: #{a_call__.2} parent=23 // pred_check_branch
        %130 = sbr.rel (%p128) target = $region28
      $region27: #{a_call__.2} parent=23 // pred_region
        %s131 = smul.u32 32, %s9
        %p132 = scmp.lt.s32.totalorder %s131, 63
        %s133 = scalar_select %p132, %s131, 63
        %s134 = smul.addr %s133, 4
        %s135 = scalar_lea.vmem %s0, %s134
        %s136 = smul.u32 32, %s9
      $region28: #{a_call__.2} parent=23 // pred_fallthru
        _
    $region24: #{a_call__.2} parent=5 // pred_fallthru
      _
    %p137 = scmp.le.s32.totalorder 1, %s9
    %p138 = scmp.lt.s32.totalorder %s9, 3
    %p139 = pnand %p137, %p138
    %p140 = pneg %p139
    // Predicated region
    $region29: #{a_call__.2} parent=5 // pred_check
      _
    $region30: #{a_call__.2} parent=5 // pred_check_branch
      %142 = sbr.rel (%p139) target = $region32
    $region31: #{a_call__.2} parent=5 // pred_region
      %s143 = ssub.s32 %s9, 1
      %s144 = smul.u32 32, %s14
      %p145 = scmp.lt.s32.totalorder %s144, 63
      %s146 = scalar_select %p145, %s144, 63
      %s147 = smul.addr %s146, 4
      %s148 = scalar_lea.vmem %s0, %s147
      %p149 = pneg %p35
      %p150 = pneg %p32
      %p151 = pneg %p56
      %p152 = pneg %p53
      %p153 = pneg %p77
      %p154 = pneg %p74
      %p155 = pneg %p103
      %p156 = pneg %p100
      %s157 = smul.u32 32, %s14
      %p158 = scmp.lt.s32.totalorder %s157, 63
      %s159 = scalar_select %p158, %s157, 63
      %s160 = smul.addr %s159, 8
      %s161 = scalar_lea.vmem %s3, %s160
      %s162 = smul.u32 32, %s14
      %p163 = scmp.lt.s32.totalorder %s162, 63
      %s164 = scalar_select %p163, %s162, 63
      %s165 = smul.addr %s164, 4
      %s166 = scalar_lea.vmem %s0, %s165
      %s167 = smul.u32 32, %s14
      %s168 = smul.u32 32, %s14
      %p169 = scmp.lt.s32.totalorder %s168, 63
      %s170 = scalar_select %p169, %s168, 63
      %s171 = smul.addr %s170, 8
      %s172 = scalar_lea.vmem %s3, %s171
      %s173 = smul.u32 32, %s14
      %v175 = vld [vmem:[%s166] sm:$0xf]
      %v176 = vld [vmem:[%s166 + $0x4] sm:$0xf]
      %v177 = vld [vmem:[%s166 + $0x8] sm:$0xf]
      %v178 = vld [vmem:[%s166 + $0xc] sm:$0xf]
      %v179 = vld [vmem:[%s166 + $0x10] sm:$0xf]
      %v180 = vld [vmem:[%s166 + $0x14] sm:$0xf]
      %v181 = vld [vmem:[%s166 + $0x18] sm:$0xf]
      %v182 = vld [vmem:[%s166 + $0x1c] sm:$0xf]
      %v183 = vld [vmem:[%s166 + $0x20] sm:$0xf]
      %v184 = vld [vmem:[%s166 + $0x24] sm:$0xf]
      %v185 = vld [vmem:[%s166 + $0x28] sm:$0xf]
      %v186 = vld [vmem:[%s166 + $0x2c] sm:$0xf]
      %v187 = vld [vmem:[%s166 + $0x30] sm:$0xf]
      %v188 = vld [vmem:[%s166 + $0x34] sm:$0xf]
      %v189 = vld [vmem:[%s166 + $0x38] sm:$0xf]
      %v190 = vld [vmem:[%s166 + $0x3c] sm:$0xf]
      %v191 = vld [vmem:[%s166 + $0x40] sm:$0xf]
      %v192 = vld [vmem:[%s166 + $0x44] sm:$0xf]
      %v193 = vld [vmem:[%s166 + $0x48] sm:$0xf]
      %v194 = vld [vmem:[%s166 + $0x4c] sm:$0xf]
      %v195 = vld [vmem:[%s166 + $0x50] sm:$0xf]
      %v196 = vld [vmem:[%s166 + $0x54] sm:$0xf]
      %v197 = vld [vmem:[%s166 + $0x58] sm:$0xf]
      %v198 = vld [vmem:[%s166 + $0x5c] sm:$0xf]
      %v199 = vld [vmem:[%s166 + $0x60] sm:$0xf]
      %v200 = vld [vmem:[%s166 + $0x64] sm:$0xf]
      %v201 = vld [vmem:[%s166 + $0x68] sm:$0xf]
      %v202 = vld [vmem:[%s166 + $0x6c] sm:$0xf]
      %v203 = vld [vmem:[%s166 + $0x70] sm:$0xf]
      %v204 = vld [vmem:[%s166 + $0x74] sm:$0xf]
      %v205 = vld [vmem:[%s166 + $0x78] sm:$0xf]
      %v206 = vld [vmem:[%s166 + $0x7c] sm:$0xf]
      %v207 = vld [vmem:[%s1] sm:$0xf]
      %v208 = vld [vmem:[%s1 + $0x4] sm:$0xf]
      %v209 = vld [vmem:[%s1 + $0x8] sm:$0xf]
      %v210 = vld [vmem:[%s1 + $0xc] sm:$0xf]
      %v211 = vld [vmem:[%s1 + $0x10] sm:$0x3]
      %v212 = vld [vmem:[%s2] sm:$0x1]
      %v214 = vlaneseq
      %v215 = vshrl.u32 %v214, 7
      %v216 = vsub.s32 0, %v215
      %v217 = vrot.slane %v212, %v216
      %v251 = vunpack.c.l.b16 %v175
      %v252 = vunpack.c.l.b16 %v176
      %v253 = vunpack.c.l.b16 %v177
      %v254 = vunpack.c.l.b16 %v178
      %v255 = vunpack.c.l.b16 %v179
      %v256 = vunpack.c.l.b16 %v180
      %v257 = vunpack.c.l.b16 %v181
      %v258 = vunpack.c.l.b16 %v182
      %v259 = vunpack.c.l.b16 %v183
      %v260 = vunpack.c.l.b16 %v184
      %v261 = vunpack.c.l.b16 %v185
      %v262 = vunpack.c.l.b16 %v186
      %v263 = vunpack.c.l.b16 %v187
      %v264 = vunpack.c.l.b16 %v188
      %v265 = vunpack.c.l.b16 %v189
      %v266 = vunpack.c.l.b16 %v190
      %v267 = vunpack.c.l.b16 %v191
      %v268 = vunpack.c.l.b16 %v192
      %v269 = vunpack.c.l.b16 %v193
      %v270 = vunpack.c.l.b16 %v194
      %v271 = vunpack.c.l.b16 %v195
      %v272 = vunpack.c.l.b16 %v196
      %v273 = vunpack.c.l.b16 %v197
      %v274 = vunpack.c.l.b16 %v198
      %v275 = vunpack.c.l.b16 %v199
      %v276 = vunpack.c.l.b16 %v200
      %v277 = vunpack.c.l.b16 %v201
      %v278 = vunpack.c.l.b16 %v202
      %v279 = vunpack.c.l.b16 %v203
      %v280 = vunpack.c.l.b16 %v204
      %v281 = vunpack.c.l.b16 %v205
      %v282 = vunpack.c.l.b16 %v206
      %v283 = vpack.c.b16 %v252, %v251
      %v284 = vpack.c.b16 %v254, %v253
      %v285 = vpack.c.b16 %v256, %v255
      %v286 = vpack.c.b16 %v258, %v257
      %v287 = vpack.c.b16 %v260, %v259
      %v288 = vpack.c.b16 %v262, %v261
      %v289 = vpack.c.b16 %v264, %v263
      %v290 = vpack.c.b16 %v266, %v265
      %v291 = vpack.c.b16 %v268, %v267
      %v292 = vpack.c.b16 %v270, %v269
      %v293 = vpack.c.b16 %v272, %v271
      %v294 = vpack.c.b16 %v274, %v273
      %v295 = vpack.c.b16 %v276, %v275
      %v296 = vpack.c.b16 %v278, %v277
      %v297 = vpack.c.b16 %v280, %v279
      %v298 = vpack.c.b16 %v282, %v281
      %v304 = vunpack.c.l.b16 %v207
      %v305 = vunpack.c.l.b16 %v208
      %v306 = vunpack.c.l.b16 %v209
      %v307 = vunpack.c.l.b16 %v210
      %v308 = vunpack.c.l.b16 %v211
      %v309 = vpack.c.b16 %v305, %v304
      %v310 = vpack.c.b16 %v307, %v306
      %v311 = vpack.c.b16 %v308, %v308
      %vm314 = vcmask 293888
      %v316 = vsel %vm314, %v283, 0
      %v319 = vsel %vm314, %v284, 0
      %v322 = vsel %vm314, %v285, 0
      %v325 = vsel %vm314, %v286, 0
      %v328 = vsel %vm314, %v287, 0
      %v331 = vsel %vm314, %v288, 0
      %v334 = vsel %vm314, %v289, 0
      %v337 = vsel %vm314, %v290, 0
      %v340 = vsel %vm314, %v291, 0
      %v343 = vsel %vm314, %v292, 0
      %v346 = vsel %vm314, %v293, 0
      %v349 = vsel %vm314, %v294, 0
      %v352 = vsel %vm314, %v295, 0
      %v355 = vsel %vm314, %v296, 0
      %v358 = vsel %vm314, %v297, 0
      %v361 = vsel %vm314, %v298, 0
      %vm363 = vcmask 1041408
      %v365 = vsel %vm363, %v311, 0
      %367 = vmatprep.subr.bf16.mxu0 0
      %368 = vmatpush1.bf16.msra.mxu0 %v309
      %369 = vmatprep.subr.bf16.mxu0 0
      %370 = vmatpush1.bf16.msra.mxu0 %v310
      %371 = vmatprep.subr.bf16.mxu0 0
      %372 = vmatpush1.bf16.msra.mxu0 %v365
      %373 = vmatprep.subr.bf16.mxu0 0
      %374 = vmatpush1.bf16.msra.mxu0 0
      %375 = vmatprep.subr.bf16.mxu0 0
      %376 = vmatpush1.bf16.msra.mxu0 0
      %377 = vmatprep.subr.bf16.mxu0 0
      %378 = vmatpush1.bf16.msra.mxu0 0
      %379 = vmatprep.subr.bf16.mxu0 0
      %380 = vmatpush1.bf16.msra.mxu0 0
      %381 = vmatprep.subr.bf16.mxu0 0
      %382 = vmatpush1.bf16.msra.mxu0 0
      %383 = vmatprep.subr.bf16.mxu0 0
      %384 = vmatpush1.bf16.msra.mxu0 0
      %385 = vmatprep.subr.bf16.mxu0 0
      %386 = vmatpush1.bf16.msra.mxu0 0
      %387 = vmatprep.subr.bf16.mxu0 0
      %388 = vmatpush1.bf16.msra.mxu0 0
      %389 = vmatprep.subr.bf16.mxu0 0
      %390 = vmatpush1.bf16.msra.mxu0 0
      %391 = vmatprep.subr.bf16.mxu0 0
      %392 = vmatpush1.bf16.msra.mxu0 0
      %393 = vmatprep.subr.bf16.mxu0 0
      %394 = vmatpush1.bf16.msra.mxu0 0
      %395 = vmatprep.subr.bf16.mxu0 0
      %396 = vmatpush1.bf16.msra.mxu0 0
      %397 = vmatprep.subr.bf16.mxu0 0
      %398 = vmatpush1.bf16.msra.mxu0 0
      %399 = vmatprep.mubr.bf16.mxu0 0
      %400 = vmatmul.mubr.bf16.gmra.mrb[0].mxu0 %v316
      %v401 = vpop.f32.mrb[0].mxu0
      %v402 = vadd.f32 %v217, %v401
      %v403 = vpop.f32.mrb[0].mxu0
      %v404 = vpop.f32.mrb[0].mxu0
      %v405 = vadd.f32 %v217, %v404
      %v406 = vpop.f32.mrb[0].mxu0
      %407 = vmatprep.mubr.bf16.mxu0 0
      %408 = vmatmul.mubr.bf16.gmra.mrb[0].mxu0 %v319
      %v409 = vpop.f32.mrb[0].mxu0
      %v410 = vadd.f32 %v217, %v409
      %v411 = vpop.f32.mrb[0].mxu0
      %v412 = vpop.f32.mrb[0].mxu0
      %v413 = vadd.f32 %v217, %v412
      %v414 = vpop.f32.mrb[0].mxu0
      %415 = vmatprep.mubr.bf16.mxu0 0
      %416 = vmatmul.mubr.bf16.gmra.mrb[0].mxu0 %v322
      %v417 = vpop.f32.mrb[0].mxu0
      %v418 = vadd.f32 %v217, %v417
      %v419 = vpop.f32.mrb[0].mxu0
      %v420 = vpop.f32.mrb[0].mxu0
      %v421 = vadd.f32 %v217, %v420
      %v422 = vpop.f32.mrb[0].mxu0
      %423 = vmatprep.mubr.bf16.mxu0 0
      %424 = vmatmul.mubr.bf16.gmra.mrb[0].mxu0 %v325
      %v425 = vpop.f32.mrb[0].mxu0
      %v426 = vadd.f32 %v217, %v425
      %v427 = vpop.f32.mrb[0].mxu0
      %v428 = vpop.f32.mrb[0].mxu0
      %v429 = vadd.f32 %v217, %v428
      %v430 = vpop.f32.mrb[0].mxu0
      %431 = vmatprep.mubr.bf16.mxu0 0
      %432 = vmatmul.mubr.bf16.gmra.mrb[0].mxu0 %v328
      %v433 = vpop.f32.mrb[0].mxu0
      %v434 = vadd.f32 %v217, %v433
      %v435 = vpop.f32.mrb[0].mxu0
      %v436 = vpop.f32.mrb[0].mxu0
      %v437 = vadd.f32 %v217, %v436
      %v438 = vpop.f32.mrb[0].mxu0
      %439 = vmatprep.mubr.bf16.mxu0 0
      %440 = vmatmul.mubr.bf16.gmra.mrb[0].mxu0 %v331
      %v441 = vpop.f32.mrb[0].mxu0
      %v442 = vadd.f32 %v217, %v441
      %v443 = vpop.f32.mrb[0].mxu0
      %v444 = vpop.f32.mrb[0].mxu0
      %v445 = vadd.f32 %v217, %v444
      %v446 = vpop.f32.mrb[0].mxu0
      %447 = vmatprep.mubr.bf16.mxu0 0
      %448 = vmatmul.mubr.bf16.gmra.mrb[0].mxu0 %v334
      %v449 = vpop.f32.mrb[0].mxu0
      %v450 = vadd.f32 %v217, %v449
      %v451 = vpop.f32.mrb[0].mxu0
      %v452 = vpop.f32.mrb[0].mxu0
      %v453 = vadd.f32 %v217, %v452
      %v454 = vpop.f32.mrb[0].mxu0
      %455 = vmatprep.mubr.bf16.mxu0 0
      %456 = vmatmul.mubr.bf16.gmra.mrb[0].mxu0 %v337
      %v457 = vpop.f32.mrb[0].mxu0
      %v458 = vadd.f32 %v217, %v457
      %v459 = vpop.f32.mrb[0].mxu0
      %v460 = vpop.f32.mrb[0].mxu0
      %v461 = vadd.f32 %v217, %v460
      %v462 = vpop.f32.mrb[0].mxu0
      %463 = vmatprep.mubr.bf16.mxu0 0
      %464 = vmatmul.mubr.bf16.gmra.mrb[0].mxu0 %v340
      %v465 = vpop.f32.mrb[0].mxu0
      %v466 = vadd.f32 %v217, %v465
      %v467 = vpop.f32.mrb[0].mxu0
      %v468 = vpop.f32.mrb[0].mxu0
      %v469 = vadd.f32 %v217, %v468
      %v470 = vpop.f32.mrb[0].mxu0
      %471 = vmatprep.mubr.bf16.mxu0 0
      %472 = vmatmul.mubr.bf16.gmra.mrb[0].mxu0 %v343
      %v473 = vpop.f32.mrb[0].mxu0
      %v474 = vadd.f32 %v217, %v473
      %v475 = vpop.f32.mrb[0].mxu0
      %v476 = vpop.f32.mrb[0].mxu0
      %v477 = vadd.f32 %v217, %v476
      %v478 = vpop.f32.mrb[0].mxu0
      %479 = vmatprep.mubr.bf16.mxu0 0
      %480 = vmatmul.mubr.bf16.gmra.mrb[0].mxu0 %v346
      %v481 = vpop.f32.mrb[0].mxu0
      %v482 = vadd.f32 %v217, %v481
      %v483 = vpop.f32.mrb[0].mxu0
      %v484 = vpop.f32.mrb[0].mxu0
      %v485 = vadd.f32 %v217, %v484
      %v486 = vpop.f32.mrb[0].mxu0
      %487 = vmatprep.mubr.bf16.mxu0 0
      %488 = vmatmul.mubr.bf16.gmra.mrb[0].mxu0 %v349
      %v489 = vpop.f32.mrb[0].mxu0
      %v490 = vadd.f32 %v217, %v489
      %v491 = vpop.f32.mrb[0].mxu0
      %v492 = vpop.f32.mrb[0].mxu0
      %v493 = vadd.f32 %v217, %v492
      %v494 = vpop.f32.mrb[0].mxu0
      %495 = vmatprep.mubr.bf16.mxu0 0
      %496 = vmatmul.mubr.bf16.gmra.mrb[0].mxu0 %v352
      %v497 = vpop.f32.mrb[0].mxu0
      %v498 = vadd.f32 %v217, %v497
      %v499 = vpop.f32.mrb[0].mxu0
      %v500 = vpop.f32.mrb[0].mxu0
      %v501 = vadd.f32 %v217, %v500
      %v502 = vpop.f32.mrb[0].mxu0
      %503 = vmatprep.mubr.bf16.mxu0 0
      %504 = vmatmul.mubr.bf16.gmra.mrb[0].mxu0 %v355
      %v505 = vpop.f32.mrb[0].mxu0
      %v506 = vadd.f32 %v217, %v505
      %v507 = vpop.f32.mrb[0].mxu0
      %v508 = vpop.f32.mrb[0].mxu0
      %v509 = vadd.f32 %v217, %v508
      %v510 = vpop.f32.mrb[0].mxu0
      %511 = vmatprep.mubr.bf16.mxu0 0
      %512 = vmatmul.mubr.bf16.gmra.mrb[0].mxu0 %v358
      %v513 = vpop.f32.mrb[0].mxu0
      %v514 = vadd.f32 %v217, %v513
      %v515 = vpop.f32.mrb[0].mxu0
      %v516 = vpop.f32.mrb[0].mxu0
      %v517 = vadd.f32 %v217, %v516
      %v518 = vpop.f32.mrb[0].mxu0
      %519 = vmatprep.mubr.bf16.mxu0 0
      %520 = vmatmul.mubr.bf16.gmra.mrb[0].mxu0 %v361
      %v521 = vpop.f32.mrb[0].mxu0
      %v522 = vadd.f32 %v217, %v521
      %v523 = vpop.f32.mrb[0].mxu0
      %v524 = vpop.f32.mrb[0].mxu0
      %v525 = vadd.f32 %v217, %v524
      %v526 = vpop.f32.mrb[0].mxu0
      %527 = vdwg.mxu0
      %v528 = vlaneseq
      %v529 = vand.u32 %v528, 127
      %vm530 = vcmp.ge.s32.totalorder %v529, 18
      %vm531 = vcmp.lt.s32.totalorder %v529, 27
      %vm532 = vmand %vm530, %vm531
      %v533 = vsel %vm532, %v402, -inf
      %v534 = vsel %vm532, %v405, -inf
      %v535 = vsel %vm532, %v410, -inf
      %v536 = vsel %vm532, %v413, -inf
      %v537 = vsel %vm532, %v418, -inf
      %v538 = vsel %vm532, %v421, -inf
      %v539 = vsel %vm532, %v426, -inf
      %v540 = vsel %vm532, %v429, -inf
      %v541 = vsel %vm532, %v434, -inf
      %v542 = vsel %vm532, %v437, -inf
      %v543 = vsel %vm532, %v442, -inf
      %v544 = vsel %vm532, %v445, -inf
      %v545 = vsel %vm532, %v450, -inf
      %v546 = vsel %vm532, %v453, -inf
      %v547 = vsel %vm532, %v458, -inf
      %v548 = vsel %vm532, %v461, -inf
      %v549 = vsel %vm532, %v466, -inf
      %v550 = vsel %vm532, %v469, -inf
      %v551 = vsel %vm532, %v474, -inf
      %v552 = vsel %vm532, %v477, -inf
      %v553 = vsel %vm532, %v482, -inf
      %v554 = vsel %vm532, %v485, -inf
      %v555 = vsel %vm532, %v490, -inf
      %v556 = vsel %vm532, %v493, -inf
      %v557 = vsel %vm532, %v498, -inf
      %v558 = vsel %vm532, %v501, -inf
      %v559 = vsel %vm532, %v506, -inf
      %v560 = vsel %vm532, %v509, -inf
      %v561 = vsel %vm532, %v514, -inf
      %v562 = vsel %vm532, %v517, -inf
      %v563 = vsel %vm532, %v522, -inf
      %v564 = vsel %vm532, %v525, -inf
      %565 = vmax.xlane.f32.xlu0 %v533
      %v566 = vpop.xlane.xlu0 %565
      %567 = vmax.xlane.f32.xlu0 %v534
      %v568 = vpop.xlane.xlu0 %567
      %569 = vmax.xlane.f32.xlu0 %v535
      %v570 = vpop.xlane.xlu0 %569
      %571 = vmax.xlane.f32.xlu0 %v536
      %v572 = vpop.xlane.xlu0 %571
      %573 = vmax.xlane.f32.xlu0 %v537
      %v574 = vpop.xlane.xlu0 %573
      %575 = vmax.xlane.f32.xlu0 %v538
      %v576 = vpop.xlane.xlu0 %575
      %577 = vmax.xlane.f32.xlu0 %v539
      %v578 = vpop.xlane.xlu0 %577
      %579 = vmax.xlane.f32.xlu0 %v540
      %v580 = vpop.xlane.xlu0 %579
      %581 = vmax.xlane.f32.xlu0 %v541
      %v582 = vpop.xlane.xlu0 %581
      %583 = vmax.xlane.f32.xlu0 %v542
      %v584 = vpop.xlane.xlu0 %583
      %585 = vmax.xlane.f32.xlu0 %v543
      %v586 = vpop.xlane.xlu0 %585
      %587 = vmax.xlane.f32.xlu0 %v544
      %v588 = vpop.xlane.xlu0 %587
      %589 = vmax.xlane.f32.xlu0 %v545
      %v590 = vpop.xlane.xlu0 %589
      %591 = vmax.xlane.f32.xlu0 %v546
      %v592 = vpop.xlane.xlu0 %591
      %593 = vmax.xlane.f32.xlu0 %v547
      %v594 = vpop.xlane.xlu0 %593
      %595 = vmax.xlane.f32.xlu0 %v548
      %v596 = vpop.xlane.xlu0 %595
      %597 = vmax.xlane.f32.xlu0 %v549
      %v598 = vpop.xlane.xlu0 %597
      %599 = vmax.xlane.f32.xlu0 %v550
      %v600 = vpop.xlane.xlu0 %599
      %601 = vmax.xlane.f32.xlu0 %v551
      %v602 = vpop.xlane.xlu0 %601
      %603 = vmax.xlane.f32.xlu0 %v552
      %v604 = vpop.xlane.xlu0 %603
      %605 = vmax.xlane.f32.xlu0 %v553
      %v606 = vpop.xlane.xlu0 %605
      %607 = vmax.xlane.f32.xlu0 %v554
      %v608 = vpop.xlane.xlu0 %607
      %609 = vmax.xlane.f32.xlu0 %v555
      %v610 = vpop.xlane.xlu0 %609
      %611 = vmax.xlane.f32.xlu0 %v556
      %v612 = vpop.xlane.xlu0 %611
      %613 = vmax.xlane.f32.xlu0 %v557
      %v614 = vpop.xlane.xlu0 %613
      %615 = vmax.xlane.f32.xlu0 %v558
      %v616 = vpop.xlane.xlu0 %615
      %617 = vmax.xlane.f32.xlu0 %v559
      %v618 = vpop.xlane.xlu0 %617
      %619 = vmax.xlane.f32.xlu0 %v560
      %v620 = vpop.xlane.xlu0 %619
      %621 = vmax.xlane.f32.xlu0 %v561
      %v622 = vpop.xlane.xlu0 %621
      %623 = vmax.xlane.f32.xlu0 %v562
      %v624 = vpop.xlane.xlu0 %623
      %625 = vmax.xlane.f32.xlu0 %v563
      %v626 = vpop.xlane.xlu0 %625
      %627 = vmax.xlane.f32.xlu0 %v564
      %v628 = vpop.xlane.xlu0 %627
      %v629 = vsub.f32 %v402, %v566
      %v630 = vsub.f32 %v405, %v568
      %v631 = vsub.f32 %v410, %v570
      %v632 = vsub.f32 %v413, %v572
      %v633 = vsub.f32 %v418, %v574
      %v634 = vsub.f32 %v421, %v576
      %v635 = vsub.f32 %v426, %v578
      %v636 = vsub.f32 %v429, %v580
      %v637 = vsub.f32 %v434, %v582
      %v638 = vsub.f32 %v437, %v584
      %v639 = vsub.f32 %v442, %v586
      %v640 = vsub.f32 %v445, %v588
      %v641 = vsub.f32 %v450, %v590
      %v642 = vsub.f32 %v453, %v592
      %v643 = vsub.f32 %v458, %v594
      %v644 = vsub.f32 %v461, %v596
      %v645 = vsub.f32 %v466, %v598
      %v646 = vsub.f32 %v469, %v600
      %v647 = vsub.f32 %v474, %v602
      %v648 = vsub.f32 %v477, %v604
      %v649 = vsub.f32 %v482, %v606
      %v650 = vsub.f32 %v485, %v608
      %v651 = vsub.f32 %v490, %v610
      %v652 = vsub.f32 %v493, %v612
      %v653 = vsub.f32 %v498, %v614
      %v654 = vsub.f32 %v501, %v616
      %v655 = vsub.f32 %v506, %v618
      %v656 = vsub.f32 %v509, %v620
      %v657 = vsub.f32 %v514, %v622
      %v658 = vsub.f32 %v517, %v624
      %v659 = vsub.f32 %v522, %v626
      %v660 = vsub.f32 %v525, %v628
      %v661 = vmul.f32 %v629, 1.442695
      %v662 = vpow.pop %v661
      %v663 = vmul.f32 %v630, 1.442695
      %v664 = vpow.pop %v663
      %v665 = vmul.f32 %v631, 1.442695
      %v666 = vpow.pop %v665
      %v667 = vmul.f32 %v632, 1.442695
      %v668 = vpow.pop %v667
      %v669 = vmul.f32 %v633, 1.442695
      %v670 = vpow.pop %v669
      %v671 = vmul.f32 %v634, 1.442695
      %v672 = vpow.pop %v671
      %v673 = vmul.f32 %v635, 1.442695
      %v674 = vpow.pop %v673
      %v675 = vmul.f32 %v636, 1.442695
      %v676 = vpow.pop %v675
      %v677 = vmul.f32 %v637, 1.442695
      %v678 = vpow.pop %v677
      %v679 = vmul.f32 %v638, 1.442695
      %v680 = vpow.pop %v679
      %v681 = vmul.f32 %v639, 1.442695
      %v682 = vpow.pop %v681
      %v683 = vmul.f32 %v640, 1.442695
      %v684 = vpow.pop %v683
      %v685 = vmul.f32 %v641, 1.442695
      %v686 = vpow.pop %v685
      %v687 = vmul.f32 %v642, 1.442695
      %v688 = vpow.pop %v687
      %v689 = vmul.f32 %v643, 1.442695
      %v690 = vpow.pop %v689
      %v691 = vmul.f32 %v644, 1.442695
      %v692 = vpow.pop %v691
      %v693 = vmul.f32 %v645, 1.442695
      %v694 = vpow.pop %v693
      %v695 = vmul.f32 %v646, 1.442695
      %v696 = vpow.pop %v695
      %v697 = vmul.f32 %v647, 1.442695
      %v698 = vpow.pop %v697
      %v699 = vmul.f32 %v648, 1.442695
      %v700 = vpow.pop %v699
      %v701 = vmul.f32 %v649, 1.442695
      %v702 = vpow.pop %v701
      %v703 = vmul.f32 %v650, 1.442695
      %v704 = vpow.pop %v703
      %v705 = vmul.f32 %v651, 1.442695
      %v706 = vpow.pop %v705
      %v707 = vmul.f32 %v652, 1.442695
      %v708 = vpow.pop %v707
      %v709 = vmul.f32 %v653, 1.442695
      %v710 = vpow.pop %v709
      %v711 = vmul.f32 %v654, 1.442695
      %v712 = vpow.pop %v711
      %v713 = vmul.f32 %v655, 1.442695
      %v714 = vpow.pop %v713
      %v715 = vmul.f32 %v656, 1.442695
      %v716 = vpow.pop %v715
      %v717 = vmul.f32 %v657, 1.442695
      %v718 = vpow.pop %v717
      %v719 = vmul.f32 %v658, 1.442695
      %v720 = vpow.pop %v719
      %v721 = vmul.f32 %v659, 1.442695
      %v722 = vpow.pop %v721
      %v723 = vmul.f32 %v660, 1.442695
      %v724 = vpow.pop %v723
      %v725 = vsel %vm532, %v662, 0.0
      %v726 = vsel %vm532, %v664, 0.0
      %v727 = vsel %vm532, %v666, 0.0
      %v728 = vsel %vm532, %v668, 0.0
      %v729 = vsel %vm532, %v670, 0.0
      %v730 = vsel %vm532, %v672, 0.0
      %v731 = vsel %vm532, %v674, 0.0
      %v732 = vsel %vm532, %v676, 0.0
      %v733 = vsel %vm532, %v678, 0.0
      %v734 = vsel %vm532, %v680, 0.0
      %v735 = vsel %vm532, %v682, 0.0
      %v736 = vsel %vm532, %v684, 0.0
      %v737 = vsel %vm532, %v686, 0.0
      %v738 = vsel %vm532, %v688, 0.0
      %v739 = vsel %vm532, %v690, 0.0
      %v740 = vsel %vm532, %v692, 0.0
      %v741 = vsel %vm532, %v694, 0.0
      %v742 = vsel %vm532, %v696, 0.0
      %v743 = vsel %vm532, %v698, 0.0
      %v744 = vsel %vm532, %v700, 0.0
      %v745 = vsel %vm532, %v702, 0.0
      %v746 = vsel %vm532, %v704, 0.0
      %v747 = vsel %vm532, %v706, 0.0
      %v748 = vsel %vm532, %v708, 0.0
      %v749 = vsel %vm532, %v710, 0.0
      %v750 = vsel %vm532, %v712, 0.0
      %v751 = vsel %vm532, %v714, 0.0
      %v752 = vsel %vm532, %v716, 0.0
      %v753 = vsel %vm532, %v718, 0.0
      %v754 = vsel %vm532, %v720, 0.0
      %v755 = vsel %vm532, %v722, 0.0
      %v756 = vsel %vm532, %v724, 0.0
      %757 = vadd.xlane.f32.xlu0 %v725
      %v758 = vpop.xlane.xlu0 %757
      %759 = vadd.xlane.f32.xlu0 %v726
      %v760 = vpop.xlane.xlu0 %759
      %761 = vadd.xlane.f32.xlu0 %v727
      %v762 = vpop.xlane.xlu0 %761
      %763 = vadd.xlane.f32.xlu0 %v728
      %v764 = vpop.xlane.xlu0 %763
      %765 = vadd.xlane.f32.xlu0 %v729
      %v766 = vpop.xlane.xlu0 %765
      %767 = vadd.xlane.f32.xlu0 %v730
      %v768 = vpop.xlane.xlu0 %767
      %769 = vadd.xlane.f32.xlu0 %v731
      %v770 = vpop.xlane.xlu0 %769
      %771 = vadd.xlane.f32.xlu0 %v732
      %v772 = vpop.xlane.xlu0 %771
      %773 = vadd.xlane.f32.xlu0 %v733
      %v774 = vpop.xlane.xlu0 %773
      %775 = vadd.xlane.f32.xlu0 %v734
      %v776 = vpop.xlane.xlu0 %775
      %777 = vadd.xlane.f32.xlu0 %v735
      %v778 = vpop.xlane.xlu0 %777
      %779 = vadd.xlane.f32.xlu0 %v736
      %v780 = vpop.xlane.xlu0 %779
      %781 = vadd.xlane.f32.xlu0 %v737
      %v782 = vpop.xlane.xlu0 %781
      %783 = vadd.xlane.f32.xlu0 %v738
      %v784 = vpop.xlane.xlu0 %783
      %785 = vadd.xlane.f32.xlu0 %v739
      %v786 = vpop.xlane.xlu0 %785
      %787 = vadd.xlane.f32.xlu0 %v740
      %v788 = vpop.xlane.xlu0 %787
      %789 = vadd.xlane.f32.xlu0 %v741
      %v790 = vpop.xlane.xlu0 %789
      %791 = vadd.xlane.f32.xlu0 %v742
      %v792 = vpop.xlane.xlu0 %791
      %793 = vadd.xlane.f32.xlu0 %v743
      %v794 = vpop.xlane.xlu0 %793
      %795 = vadd.xlane.f32.xlu0 %v744
      %v796 = vpop.xlane.xlu0 %795
      %797 = vadd.xlane.f32.xlu0 %v745
      %v798 = vpop.xlane.xlu0 %797
      %799 = vadd.xlane.f32.xlu0 %v746
      %v800 = vpop.xlane.xlu0 %799
      %801 = vadd.xlane.f32.xlu0 %v747
      %v802 = vpop.xlane.xlu0 %801
      %803 = vadd.xlane.f32.xlu0 %v748
      %v804 = vpop.xlane.xlu0 %803
      %805 = vadd.xlane.f32.xlu0 %v749
      %v806 = vpop.xlane.xlu0 %805
      %807 = vadd.xlane.f32.xlu0 %v750
      %v808 = vpop.xlane.xlu0 %807
      %809 = vadd.xlane.f32.xlu0 %v751
      %v810 = vpop.xlane.xlu0 %809
      %811 = vadd.xlane.f32.xlu0 %v752
      %v812 = vpop.xlane.xlu0 %811
      %813 = vadd.xlane.f32.xlu0 %v753
      %v814 = vpop.xlane.xlu0 %813
      %815 = vadd.xlane.f32.xlu0 %v754
      %v816 = vpop.xlane.xlu0 %815
      %817 = vadd.xlane.f32.xlu0 %v755
      %v818 = vpop.xlane.xlu0 %817
      %819 = vadd.xlane.f32.xlu0 %v756
      %v820 = vpop.xlane.xlu0 %819
      %v821 = vrcp.pop %v758
      %v822 = vmul.f32 %v725, %v821
      %v823 = vrcp.pop %v760
      %v824 = vmul.f32 %v726, %v823
      %v825 = vrcp.pop %v762
      %v826 = vmul.f32 %v727, %v825
      %v827 = vrcp.pop %v764
      %v828 = vmul.f32 %v728, %v827
      %v829 = vrcp.pop %v766
      %v830 = vmul.f32 %v729, %v829
      %v831 = vrcp.pop %v768
      %v832 = vmul.f32 %v730, %v831
      %v833 = vrcp.pop %v770
      %v834 = vmul.f32 %v731, %v833
      %v835 = vrcp.pop %v772
      %v836 = vmul.f32 %v732, %v835
      %v837 = vrcp.pop %v774
      %v838 = vmul.f32 %v733, %v837
      %v839 = vrcp.pop %v776
      %v840 = vmul.f32 %v734, %v839
      %v841 = vrcp.pop %v778
      %v842 = vmul.f32 %v735, %v841
      %v843 = vrcp.pop %v780
      %v844 = vmul.f32 %v736, %v843
      %v845 = vrcp.pop %v782
      %v846 = vmul.f32 %v737, %v845
      %v847 = vrcp.pop %v784
      %v848 = vmul.f32 %v738, %v847
      %v849 = vrcp.pop %v786
      %v850 = vmul.f32 %v739, %v849
      %v851 = vrcp.pop %v788
      %v852 = vmul.f32 %v740, %v851
      %v853 = vrcp.pop %v790
      %v854 = vmul.f32 %v741, %v853
      %v855 = vrcp.pop %v792
      %v856 = vmul.f32 %v742, %v855
      %v857 = vrcp.pop %v794
      %v858 = vmul.f32 %v743, %v857
      %v859 = vrcp.pop %v796
      %v860 = vmul.f32 %v744, %v859
      %v861 = vrcp.pop %v798
      %v862 = vmul.f32 %v745, %v861
      %v863 = vrcp.pop %v800
      %v864 = vmul.f32 %v746, %v863
      %v865 = vrcp.pop %v802
      %v866 = vmul.f32 %v747, %v865
      %v867 = vrcp.pop %v804
      %v868 = vmul.f32 %v748, %v867
      %v869 = vrcp.pop %v806
      %v870 = vmul.f32 %v749, %v869
      %v871 = vrcp.pop %v808
      %v872 = vmul.f32 %v750, %v871
      %v873 = vrcp.pop %v810
      %v874 = vmul.f32 %v751, %v873
      %v875 = vrcp.pop %v812
      %v876 = vmul.f32 %v752, %v875
      %v877 = vrcp.pop %v814
      %v878 = vmul.f32 %v753, %v877
      %v879 = vrcp.pop %v816
      %v880 = vmul.f32 %v754, %v879
      %v881 = vrcp.pop %v818
      %v882 = vmul.f32 %v755, %v881
      %v883 = vrcp.pop %v820
      %v884 = vmul.f32 %v756, %v883
      %v885 = vsel %vm532, %v822, %v402
      %v886 = vsel %vm532, %v824, %v405
      %v887 = vsel %vm532, %v826, %v410
      %v888 = vsel %vm532, %v828, %v413
      %v889 = vsel %vm532, %v830, %v418
      %v890 = vsel %vm532, %v832, %v421
      %v891 = vsel %vm532, %v834, %v426
      %v892 = vsel %vm532, %v836, %v429
      %v893 = vsel %vm532, %v838, %v434
      %v894 = vsel %vm532, %v840, %v437
      %v895 = vsel %vm532, %v842, %v442
      %v896 = vsel %vm532, %v844, %v445
      %v897 = vsel %vm532, %v846, %v450
      %v898 = vsel %vm532, %v848, %v453
      %v899 = vsel %vm532, %v850, %v458
      %v900 = vsel %vm532, %v852, %v461
      %v901 = vsel %vm532, %v854, %v466
      %v902 = vsel %vm532, %v856, %v469
      %v903 = vsel %vm532, %v858, %v474
      %v904 = vsel %vm532, %v860, %v477
      %v905 = vsel %vm532, %v862, %v482
      %v906 = vsel %vm532, %v864, %v485
      %v907 = vsel %vm532, %v866, %v490
      %v908 = vsel %vm532, %v868, %v493
      %v909 = vsel %vm532, %v870, %v498
      %v910 = vsel %vm532, %v872, %v501
      %v911 = vsel %vm532, %v874, %v506
      %v912 = vsel %vm532, %v876, %v509
      %v913 = vsel %vm532, %v878, %v514
      %v914 = vsel %vm532, %v880, %v517
      %v915 = vsel %vm532, %v882, %v522
      %v916 = vsel %vm532, %v884, %v525
      %917 = vst [vmem:[%s172] sm:$0xff] %v885
      %918 = vst [vmem:[%s172 + $0x8] sm:$0xff] %v886
      %919 = vst [vmem:[%s172 + $0x10] sm:$0xff] %v887
      %920 = vst [vmem:[%s172 + $0x18] sm:$0xff] %v888
      %921 = vst [vmem:[%s172 + $0x20] sm:$0xff] %v889
      %922 = vst [vmem:[%s172 + $0x28] sm:$0xff] %v890
      %923 = vst [vmem:[%s172 + $0x30] sm:$0xff] %v891
      %924 = vst [vmem:[%s172 + $0x38] sm:$0xff] %v892
      %925 = vst [vmem:[%s172 + $0x40] sm:$0xff] %v893
      %926 = vst [vmem:[%s172 + $0x48] sm:$0xff] %v894
      %927 = vst [vmem:[%s172 + $0x50] sm:$0xff] %v895
      %928 = vst [vmem:[%s172 + $0x58] sm:$0xff] %v896
      %929 = vst [vmem:[%s172 + $0x60] sm:$0xff] %v897
      %930 = vst [vmem:[%s172 + $0x68] sm:$0xff] %v898
      %931 = vst [vmem:[%s172 + $0x70] sm:$0xff] %v899
      %932 = vst [vmem:[%s172 + $0x78] sm:$0xff] %v900
      %933 = vst [vmem:[%s172 + $0x80] sm:$0xff] %v901
      %934 = vst [vmem:[%s172 + $0x88] sm:$0xff] %v902
      %935 = vst [vmem:[%s172 + $0x90] sm:$0xff] %v903
      %936 = vst [vmem:[%s172 + $0x98] sm:$0xff] %v904
      %937 = vst [vmem:[%s172 + $0xa0] sm:$0xff] %v905
      %938 = vst [vmem:[%s172 + $0xa8] sm:$0xff] %v906
      %939 = vst [vmem:[%s172 + $0xb0] sm:$0xff] %v907
      %940 = vst [vmem:[%s172 + $0xb8] sm:$0xff] %v908
      %941 = vst [vmem:[%s172 + $0xc0] sm:$0xff] %v909
      %942 = vst [vmem:[%s172 + $0xc8] sm:$0xff] %v910
      %943 = vst [vmem:[%s172 + $0xd0] sm:$0xff] %v911
      %944 = vst [vmem:[%s172 + $0xd8] sm:$0xff] %v912
      %945 = vst [vmem:[%s172 + $0xe0] sm:$0xff] %v913
      %946 = vst [vmem:[%s172 + $0xe8] sm:$0xff] %v914
      %947 = vst [vmem:[%s172 + $0xf0] sm:$0xff] %v915
      %948 = vst [vmem:[%s172 + $0xf8] sm:$0xff] %v916
      %s949 = smul.u32 32, %s14
      %p950 = scmp.lt.s32.totalorder %s949, 63
      %s951 = scalar_select %p950, %s949, 63
      %s952 = smul.addr %s951, 8
      %s953 = scalar_lea.vmem %s3, %s952
      // Predicated region
      $region33: #{a_call__.2} parent=31 // pred_check
        %p954 = pneg %p100
      $region34: #{a_call__.2} parent=31 // pred_check_branch
        %956 = sbr.rel (%p954) target = $region36
      $region35: #{a_call__.2} parent=31 // pred_region
        %s957 = smul.u32 32, %s14
      $region36: #{a_call__.2} parent=31 // pred_fallthru
        _
    $region32: #{a_call__.2} parent=5 // pred_fallthru
      _
    %p958 = scmp.le.s32.totalorder 2, %s9
    // Predicated region
    $region37: #{a_call__.2} parent=5 // pred_check
      %p959 = pneg %p958
    $region38: #{a_call__.2} parent=5 // pred_check_branch
      %961 = sbr.rel (%p959) target = $region40
    $region39: #{a_call__.2} parent=5 // pred_region
      %s962 = ssub.s32 %s9, 2
      // Predicated region
      $region41: #{a_call__.2} parent=39 // pred_check
        %p963 = pneg %p106
      $region42: #{a_call__.2} parent=39 // pred_check_branch
        %965 = sbr.rel (%p963) target = $region44
      $region43: #{a_call__.2} parent=39 // pred_region
        %s966 = smul.u32 32, %s15
        %p967 = scmp.lt.s32.totalorder %s966, 63
        %s968 = scalar_select %p967, %s966, 63
        %s969 = smul.addr %s968, 8
        %s970 = scalar_lea.vmem %s3, %s969
      $region44: #{a_call__.2} parent=39 // pred_fallthru
        _
    $region40: #{a_call__.2} parent=5 // pred_fallthru
      _
  $region6: #{a_call__.2} parent=0 // loop_footer
    %s13 = sadd.s32 1, %s9
  $region7: #{a_call__.2} parent=0 // loop_footer_branch
    %8 = sbr.rel target = $region3
  $region8: #{a_call__.2} parent=0 // loop_exit
    _

// kernel: mul.8
$region0: #{mul.8}
  #allocation0 [shape = 's32[1]{0}', space=sflag, size = 0x4, scoped, tag = 'scoped memory for mul.8']
  %s0 = inlined_call_operand.vmem [shape: f32[512,36], index: 0, kind: input, shape index: {}]
  %s1 = inlined_call_operand.vmem [shape: f32[512,36], index: 1, kind: input, shape index: {}]
  %s2 = inlined_call_operand.vmem [shape: f32[512,36], index: 2, kind: output, shape index: {}]
  %v3 = vld [vmem:[%s0] sm:$0xff]
  %v4 = vld [vmem:[%s1] sm:$0xff]
  %5 = xla_tuple %v3, %v4
  %6 = xla_tuple %5
  %v7 = vmul.f32 %v3, %v4
  %8 = xla_tuple %v7
  %9 = vst [vmem:[%s2] sm:$0xff] %v7
  %s10 = scalar_lea.vmem %s0, 32
  %v11 = vld [vmem:[%s10] sm:$0xff]
  %s12 = scalar_lea.vmem %s1, 32
  %v13 = vld [vmem:[%s12] sm:$0xff]
  %14 = xla_tuple %v11, %v13
  %15 = xla_tuple %14
  %v16 = vmul.f32 %v11, %v13
  %17 = xla_tuple %v16
  %s18 = scalar_lea.vmem %s2, 32
  %19 = vst [vmem:[%s18] sm:$0xff] %v16
  %s20 = scalar_lea.vmem %s0, 64
  %v21 = vld [vmem:[%s20] sm:$0xff]
  %s22 = scalar_lea.vmem %s1, 64
  %v23 = vld [vmem:[%s22] sm:$0xff]
  %24 = xla_tuple %v21, %v23
  %25 = xla_tuple %24
  %v26 = vmul.f32 %v21, %v23
  %27 = xla_tuple %v26
  %s28 = scalar_lea.vmem %s2, 64
  %29 = vst [vmem:[%s28] sm:$0xff] %v26
  %s30 = scalar_lea.vmem %s0, 96
  %v31 = vld [vmem:[%s30] sm:$0xff]
  %s32 = scalar_lea.vmem %s1, 96
  %v33 = vld [vmem:[%s32] sm:$0xff]
  %34 = xla_tuple %v31, %v33
  %35 = xla_tuple %34
  %v36 = vmul.f32 %v31, %v33
  %37 = xla_tuple %v36
  %s38 = scalar_lea.vmem %s2, 96
  %39 = vst [vmem:[%s38] sm:$0xff] %v36
  %s40 = scalar_lea.vmem %s0, 128
  %v41 = vld [vmem:[%s40] sm:$0xff]
  %s42 = scalar_lea.vmem %s1, 128
  %v43 = vld [vmem:[%s42] sm:$0xff]
  %44 = xla_tuple %v41, %v43
  %45 = xla_tuple %44
  %v46 = vmul.f32 %v41, %v43
  %47 = xla_tuple %v46
  %s48 = scalar_lea.vmem %s2, 128
  %49 = vst [vmem:[%s48] sm:$0xff] %v46
  %s50 = scalar_lea.vmem %s0, 8
  %v51 = vld [vmem:[%s50] sm:$0xff]
  %s52 = scalar_lea.vmem %s1, 8
  %v53 = vld [vmem:[%s52] sm:$0xff]
  %54 = xla_tuple %v51, %v53
  %55 = xla_tuple %54
  %v56 = vmul.f32 %v51, %v53
  %57 = xla_tuple %v56
  %s58 = scalar_lea.vmem %s2, 8
  %59 = vst [vmem:[%s58] sm:$0xff] %v56
  %s60 = scalar_lea.vmem %s0, 40
  %v61 = vld [vmem:[%s60] sm:$0xff]
  %s62 = scalar_lea.vmem %s1, 40
  %v63 = vld [vmem:[%s62] sm:$0xff]
  %64 = xla_tuple %v61, %v63
  %65 = xla_tuple %64
  %v66 = vmul.f32 %v61, %v63
  %67 = xla_tuple %v66
  %s68 = scalar_lea.vmem %s2, 40
  %69 = vst [vmem:[%s68] sm:$0xff] %v66
  %s70 = scalar_lea.vmem %s0, 72
  %v71 = vld [vmem:[%s70] sm:$0xff]
  %s72 = scalar_lea.vmem %s1, 72
  %v73 = vld [vmem:[%s72] sm:$0xff]
  %74 = xla_tuple %v71, %v73
  %75 = xla_tuple %74
  %v76 = vmul.f32 %v71, %v73
  %77 = xla_tuple %v76
  %s78 = scalar_lea.vmem %s2, 72
  %79 = vst [vmem:[%s78] sm:$0xff] %v76
  %s80 = scalar_lea.vmem %s0, 104
  %v81 = vld [vmem:[%s80] sm:$0xff]
  %s82 = scalar_lea.vmem %s1, 104
  %v83 = vld [vmem:[%s82] sm:$0xff]
  %84 = xla_tuple %v81, %v83
  %85 = xla_tuple %84
  %v86 = vmul.f32 %v81, %v83
  %87 = xla_tuple %v86
  %s88 = scalar_lea.vmem %s2, 104
  %89 = vst [vmem:[%s88] sm:$0xff] %v86
  %s90 = scalar_lea.vmem %s0, 136
  %v91 = vld [vmem:[%s90] sm:$0xff]
  %s92 = scalar_lea.vmem %s1, 136
  %v93 = vld [vmem:[%s92] sm:$0xff]
  %94 = xla_tuple %v91, %v93
  %95 = xla_tuple %94
  %v96 = vmul.f32 %v91, %v93
  %97 = xla_tuple %v96
  %s98 = scalar_lea.vmem %s2, 136
  %99 = vst [vmem:[%s98] sm:$0xff] %v96
  %s100 = scalar_lea.vmem %s0, 16
  %v101 = vld [vmem:[%s100] sm:$0xff]
  %s102 = scalar_lea.vmem %s1, 16
  %v103 = vld [vmem:[%s102] sm:$0xff]
  %104 = xla_tuple %v101, %v103
  %105 = xla_tuple %104
  %v106 = vmul.f32 %v101, %v103
  %107 = xla_tuple %v106
  %s108 = scalar_lea.vmem %s2, 16
  %109 = vst [vmem:[%s108] sm:$0xff] %v106
  %s110 = scalar_lea.vmem %s0, 48
  %v111 = vld [vmem:[%s110] sm:$0xff]
  %s112 = scalar_lea.vmem %s1, 48
  %v113 = vld [vmem:[%s112] sm:$0xff]
  %114 = xla_tuple %v111, %v113
  %115 = xla_tuple %114
  %v116 = vmul.f32 %v111, %v113
  %117 = xla_tuple %v116
  %s118 = scalar_lea.vmem %s2, 48
  %119 = vst [vmem:[%s118] sm:$0xff] %v116
  %s120 = scalar_lea.vmem %s0, 80
  %v121 = vld [vmem:[%s120] sm:$0xff]
  %s122 = scalar_lea.vmem %s1, 80
  %v123 = vld [vmem:[%s122] sm:$0xff]
  %124 = xla_tuple %v121, %v123
  %125 = xla_tuple %124
  %v126 = vmul.f32 %v121, %v123
  %127 = xla_tuple %v126
  %s128 = scalar_lea.vmem %s2, 80
  %129 = vst [vmem:[%s128] sm:$0xff] %v126
  %s130 = scalar_lea.vmem %s0, 112
  %v131 = vld [vmem:[%s130] sm:$0xff]
  %s132 = scalar_lea.vmem %s1, 112
  %v133 = vld [vmem:[%s132] sm:$0xff]
  %134 = xla_tuple %v131, %v133
  %135 = xla_tuple %134
  %v136 = vmul.f32 %v131, %v133
  %137 = xla_tuple %v136
  %s138 = scalar_lea.vmem %s2, 112
  %139 = vst [vmem:[%s138] sm:$0xff] %v136
  %s140 = scalar_lea.vmem %s0, 144
  %v141 = vld [vmem:[%s140] sm:$0xff]
  %s142 = scalar_lea.vmem %s1, 144
  %v143 = vld [vmem:[%s142] sm:$0xff]
  %144 = xla_tuple %v141, %v143
  %145 = xla_tuple %144
  %v146 = vmul.f32 %v141, %v143
  %147 = xla_tuple %v146
  %s148 = scalar_lea.vmem %s2, 144
  %149 = vst [vmem:[%s148] sm:$0xff] %v146
  %s150 = scalar_lea.vmem %s0, 24
  %v151 = vld [vmem:[%s150] sm:$0xff]
  %s152 = scalar_lea.vmem %s1, 24
  %v153 = vld [vmem:[%s152] sm:$0xff]
  %154 = xla_tuple %v151, %v153
  %155 = xla_tuple %154
  %v156 = vmul.f32 %v151, %v153
  %157 = xla_tuple %v156
  %s158 = scalar_lea.vmem %s2, 24
  %159 = vst [vmem:[%s158] sm:$0xff] %v156
  %s160 = scalar_lea.vmem %s0, 56
  %v161 = vld [vmem:[%s160] sm:$0xff]
  %s162 = scalar_lea.vmem %s1, 56
  %v163 = vld [vmem:[%s162] sm:$0xff]
  %164 = xla_tuple %v161, %v163
  %165 = xla_tuple %164
  %v166 = vmul.f32 %v161, %v163
  %167 = xla_tuple %v166
  %s168 = scalar_lea.vmem %s2, 56
  %169 = vst [vmem:[%s168] sm:$0xff] %v166
  %s170 = scalar_lea.vmem %s0, 88
  %v171 = vld [vmem:[%s170] sm:$0xff]
  %s172 = scalar_lea.vmem %s1, 88
  %v173 = vld [vmem:[%s172] sm:$0xff]
  %174 = xla_tuple %v171, %v173
  %175 = xla_tuple %174
  %v176 = vmul.f32 %v171, %v173
  %177 = xla_tuple %v176
  %s178 = scalar_lea.vmem %s2, 88
  %179 = vst [vmem:[%s178] sm:$0xff] %v176
  %s180 = scalar_lea.vmem %s0, 120
  %v181 = vld [vmem:[%s180] sm:$0xff]
  %s182 = scalar_lea.vmem %s1, 120
  %v183 = vld [vmem:[%s182] sm:$0xff]
  %184 = xla_tuple %v181, %v183
  %185 = xla_tuple %184
  %v186 = vmul.f32 %v181, %v183
  %187 = xla_tuple %v186
  %s188 = scalar_lea.vmem %s2, 120
  %189 = vst [vmem:[%s188] sm:$0xff] %v186
  %s190 = scalar_lea.vmem %s0, 152
  %v191 = vld [vmem:[%s190] sm:$0xff]
  %s192 = scalar_lea.vmem %s1, 152
  %v193 = vld [vmem:[%s192] sm:$0xff]
  %194 = xla_tuple %v191, %v193
  %195 = xla_tuple %194
  %v196 = vmul.f32 %v191, %v193
  %197 = xla_tuple %v196
  %s198 = scalar_lea.vmem %s2, 152
  %199 = vst [vmem:[%s198] sm:$0xff] %v196

// kernel: a_call__.3
$region0: #{a_call__.3}
  #allocation0 [shape = 'u32[]', space=smem, size = 0x4, offset = 0x4, fixed_abs, tag = 'smem constant byte address 0x4 - core index']
  #allocation1 [shape = 'u32[144,128]{1,0:T(1,128)}', space=vmem, size = 0x12000, scoped, tag = 'internal scratch']
  %s0 = inlined_call_operand.vmem [shape: bf16[512,36], index: 0, kind: input, shape index: {}]
  %s1 = inlined_call_operand.vmem [shape: bf16[36,128], index: 1, kind: input, shape index: {}]
  %s2 = inlined_call_operand.vmem [shape: f32[1,128], index: 2, kind: input, shape index: {}]
  %s3 = inlined_call_operand.vmem [shape: f32[512,128], index: 3, kind: output, shape index: {}]
  %s4 = sld [smem:[#allocation0]]
  $region45: #{a_call__.3} parent=0
    _
  %s6 = ssub.s32 1, %s4
  %s7 = scalar_select 0, %s6, %s4
  loop: start=0, step=1, limit=4
  $region2: #{a_call__.3} parent=0 // loop_pre_header
    _
  $region3: #{a_call__.3} parent=0 // loop_header
    %s9 = sphi 0, %s13
    %p10 = scmp.ge.s32.totalorder %s9, 4
    %s19 = sphi 0, %s21
    %s22 = sphi 0, %s19
    %s23 = sphi 0, %s22
    %s39 = sphi 0, %s23
    %s43 = sphi 0, %s43
    %s45 = sphi 0, %s43
    %s46 = sphi 0, %s45
    %s60 = sphi 0, %s46
    %s64 = sphi 0, %s64
    %s66 = sphi 0, %s64
    %s67 = sphi 0, %s66
    %s81 = sphi 0, %s67
    %s87 = sphi 0, %s89
    %s90 = sphi 0, %s87
    %s91 = sphi 0, %s90
    %s107 = sphi 0, %s91
  $region4: #{a_call__.3} parent=0 // loop_header_branch
    %12 = sbr.rel (%p10) target = $region8
  $region5: #{a_call__.3} parent=0 // loop_body
    %s14 = ssub.s32 %s9, 1
    %s15 = ssub.s32 %s9, 2
    %s16 = sadd.s32 %s9, 1
    %s17 = ssub.s32 %s9, %s16
    %p18 = scmp.eq.s32.totalorder %s17, 0
    %s20 = sadd.s32 %s19, 1
    %s21 = scalar_select %p18, %s19, %s20
    %p24 = pneg %p18
    %p25 = scmp.eq.s32.totalorder %s9, 1
    %p26 = por %p24, %p25
    %p27 = scmp.ne.s32.totalorder %s19, %s22
    %p28 = scmp.eq.s32.totalorder %s9, 0
    %p29 = por %p27, %p28
    %p30 = scmp.ne.s32.totalorder %s19, %s22
    %p31 = scmp.eq.s32.totalorder %s14, 1
    %p32 = por %p30, %p31
    %p33 = scmp.ne.s32.totalorder %s22, %s23
    %p34 = scmp.eq.s32.totalorder %s14, 0
    %p35 = por %p33, %p34
    %p36 = scmp.ne.s32.totalorder %s22, %s23
    %p37 = scmp.eq.s32.totalorder %s15, 1
    %p38 = por %p36, %p37
    %p40 = scmp.ne.s32.totalorder %s23, %s39
    %p41 = scmp.eq.s32.totalorder %s15, 0
    %p42 = por %p40, %p41
    %s44 = sadd.s32 %s43, 1
    %p47 = scmp.eq.s32.totalorder %s9, 1
    %p48 = scmp.ne.s32.totalorder %s43, %s45
    %p49 = scmp.eq.s32.totalorder %s9, 0
    %p50 = por %p48, %p49
    %p51 = scmp.ne.s32.totalorder %s43, %s45
    %p52 = scmp.eq.s32.totalorder %s14, 1
    %p53 = por %p51, %p52
    %p54 = scmp.ne.s32.totalorder %s45, %s46
    %p55 = scmp.eq.s32.totalorder %s14, 0
    %p56 = por %p54, %p55
    %p57 = scmp.ne.s32.totalorder %s45, %s46
    %p58 = scmp.eq.s32.totalorder %s15, 1
    %p59 = por %p57, %p58
    %p61 = scmp.ne.s32.totalorder %s46, %s60
    %p62 = scmp.eq.s32.totalorder %s15, 0
    %p63 = por %p61, %p62
    %s65 = sadd.s32 %s64, 1
    %p68 = scmp.eq.s32.totalorder %s9, 1
    %p69 = scmp.ne.s32.totalorder %s64, %s66
    %p70 = scmp.eq.s32.totalorder %s9, 0
    %p71 = por %p69, %p70
    %p72 = scmp.ne.s32.totalorder %s64, %s66
    %p73 = scmp.eq.s32.totalorder %s14, 1
    %p74 = por %p72, %p73
    %p75 = scmp.ne.s32.totalorder %s66, %s67
    %p76 = scmp.eq.s32.totalorder %s14, 0
    %p77 = por %p75, %p76
    %p78 = scmp.ne.s32.totalorder %s66, %s67
    %p79 = scmp.eq.s32.totalorder %s15, 1
    %p80 = por %p78, %p79
    %p82 = scmp.ne.s32.totalorder %s67, %s81
    %p83 = scmp.eq.s32.totalorder %s15, 0
    %p84 = por %p82, %p83
    %s85 = ssub.s32 %s9, %s16
    %p86 = scmp.eq.s32.totalorder %s85, 0
    %s88 = sadd.s32 %s87, 1
    %s89 = scalar_select %p86, %s87, %s88
    %p92 = pneg %p86
    %p93 = scmp.eq.s32.totalorder %s9, 1
    %p94 = por %p92, %p93
    %p95 = scmp.ne.s32.totalorder %s87, %s90
    %p96 = scmp.eq.s32.totalorder %s9, 0
    %p97 = por %p95, %p96
    %p98 = scmp.ne.s32.totalorder %s87, %s90
    %p99 = scmp.eq.s32.totalorder %s14, 1
    %p100 = por %p98, %p99
    %p101 = scmp.ne.s32.totalorder %s90, %s91
    %p102 = scmp.eq.s32.totalorder %s14, 0
    %p103 = por %p101, %p102
    %p104 = scmp.ne.s32.totalorder %s90, %s91
    %p105 = scmp.eq.s32.totalorder %s15, 1
    %p106 = por %p104, %p105
    %p108 = scmp.ne.s32.totalorder %s91, %s107
    %p109 = scmp.eq.s32.totalorder %s15, 0
    %p110 = por %p108, %p109
    %p111 = scmp.le.s32.totalorder 1, %s9
    %p112 = scmp.lt.s32.totalorder %s9, 3
    %p113 = pnand %p111, %p112
    %p114 = pneg %p113
    // Predicated region
    $region9: #{a_call__.3} parent=5 // pred_check
      _
    $region10: #{a_call__.3} parent=5 // pred_check_branch
      %116 = sbr.rel (%p113) target = $region12
    $region11: #{a_call__.3} parent=5 // pred_region
      %s117 = ssub.s32 %s9, 1
      // Predicated region
      $region13: #{a_call__.3} parent=11 // pred_check
        %p118 = pneg %p56
      $region14: #{a_call__.3} parent=11 // pred_check_branch
        %120 = sbr.rel (%p118) target = $region16
      $region15: #{a_call__.3} parent=11 // pred_region
        _
      $region16: #{a_call__.3} parent=11 // pred_fallthru
        _
      // Predicated region
      $region17: #{a_call__.3} parent=11 // pred_check
        %p121 = pneg %p77
      $region18: #{a_call__.3} parent=11 // pred_check_branch
        %123 = sbr.rel (%p121) target = $region20
      $region19: #{a_call__.3} parent=11 // pred_region
        _
      $region20: #{a_call__.3} parent=11 // pred_fallthru
        _
    $region12: #{a_call__.3} parent=5 // pred_fallthru
      _
    %p124 = scmp.lt.s32.totalorder %s9, 2
    // Predicated region
    $region21: #{a_call__.3} parent=5 // pred_check
      %p125 = pneg %p124
    $region22: #{a_call__.3} parent=5 // pred_check_branch
      %127 = sbr.rel (%p125) target = $region24
    $region23: #{a_call__.3} parent=5 // pred_region
      // Predicated region
      $region25: #{a_call__.3} parent=23 // pred_check
        %p128 = pneg %p29
      $region26: #{a_call__.3} parent=23 // pred_check_branch
        %130 = sbr.rel (%p128) target = $region28
      $region27: #{a_call__.3} parent=23 // pred_region
        %s131 = smul.u32 32, %s9
        %p132 = scmp.lt.s32.totalorder %s131, 63
        %s133 = scalar_select %p132, %s131, 63
        %s134 = smul.addr %s133, 4
        %s135 = scalar_lea.vmem %s0, %s134
        %s136 = smul.u32 32, %s9
      $region28: #{a_call__.3} parent=23 // pred_fallthru
        _
    $region24: #{a_call__.3} parent=5 // pred_fallthru
      _
    %p137 = scmp.le.s32.totalorder 1, %s9
    %p138 = scmp.lt.s32.totalorder %s9, 3
    %p139 = pnand %p137, %p138
    %p140 = pneg %p139
    // Predicated region
    $region29: #{a_call__.3} parent=5 // pred_check
      _
    $region30: #{a_call__.3} parent=5 // pred_check_branch
      %142 = sbr.rel (%p139) target = $region32
    $region31: #{a_call__.3} parent=5 // pred_region
      %s143 = ssub.s32 %s9, 1
      %s144 = smul.u32 32, %s14
      %p145 = scmp.lt.s32.totalorder %s144, 63
      %s146 = scalar_select %p145, %s144, 63
      %s147 = smul.addr %s146, 4
      %s148 = scalar_lea.vmem %s0, %s147
      %p149 = pneg %p35
      %p150 = pneg %p32
      %p151 = pneg %p56
      %p152 = pneg %p53
      %p153 = pneg %p77
      %p154 = pneg %p74
      %p155 = pneg %p103
      %p156 = pneg %p100
      %s157 = smul.u32 32, %s14
      %p158 = scmp.lt.s32.totalorder %s157, 63
      %s159 = scalar_select %p158, %s157, 63
      %s160 = smul.addr %s159, 8
      %s161 = scalar_lea.vmem %s3, %s160
      %s162 = smul.u32 32, %s14
      %p163 = scmp.lt.s32.totalorder %s162, 63
      %s164 = scalar_select %p163, %s162, 63
      %s165 = smul.addr %s164, 4
      %s166 = scalar_lea.vmem %s0, %s165
      %s167 = smul.u32 32, %s14
      %s168 = smul.u32 32, %s14
      %p169 = scmp.lt.s32.totalorder %s168, 63
      %s170 = scalar_select %p169, %s168, 63
      %s171 = smul.addr %s170, 8
      %s172 = scalar_lea.vmem %s3, %s171
      %s173 = smul.u32 32, %s14
      %v175 = vld [vmem:[%s166] sm:$0xf]
      %v176 = vld [vmem:[%s166 + $0x4] sm:$0xf]
      %v177 = vld [vmem:[%s166 + $0x8] sm:$0xf]
      %v178 = vld [vmem:[%s166 + $0xc] sm:$0xf]
      %v179 = vld [vmem:[%s166 + $0x10] sm:$0xf]
      %v180 = vld [vmem:[%s166 + $0x14] sm:$0xf]
      %v181 = vld [vmem:[%s166 + $0x18] sm:$0xf]
      %v182 = vld [vmem:[%s166 + $0x1c] sm:$0xf]
      %v183 = vld [vmem:[%s166 + $0x20] sm:$0xf]
      %v184 = vld [vmem:[%s166 + $0x24] sm:$0xf]
      %v185 = vld [vmem:[%s166 + $0x28] sm:$0xf]
      %v186 = vld [vmem:[%s166 + $0x2c] sm:$0xf]
      %v187 = vld [vmem:[%s166 + $0x30] sm:$0xf]
      %v188 = vld [vmem:[%s166 + $0x34] sm:$0xf]
      %v189 = vld [vmem:[%s166 + $0x38] sm:$0xf]
      %v190 = vld [vmem:[%s166 + $0x3c] sm:$0xf]
      %v191 = vld [vmem:[%s166 + $0x40] sm:$0xf]
      %v192 = vld [vmem:[%s166 + $0x44] sm:$0xf]
      %v193 = vld [vmem:[%s166 + $0x48] sm:$0xf]
      %v194 = vld [vmem:[%s166 + $0x4c] sm:$0xf]
      %v195 = vld [vmem:[%s166 + $0x50] sm:$0xf]
      %v196 = vld [vmem:[%s166 + $0x54] sm:$0xf]
      %v197 = vld [vmem:[%s166 + $0x58] sm:$0xf]
      %v198 = vld [vmem:[%s166 + $0x5c] sm:$0xf]
      %v199 = vld [vmem:[%s166 + $0x60] sm:$0xf]
      %v200 = vld [vmem:[%s166 + $0x64] sm:$0xf]
      %v201 = vld [vmem:[%s166 + $0x68] sm:$0xf]
      %v202 = vld [vmem:[%s166 + $0x6c] sm:$0xf]
      %v203 = vld [vmem:[%s166 + $0x70] sm:$0xf]
      %v204 = vld [vmem:[%s166 + $0x74] sm:$0xf]
      %v205 = vld [vmem:[%s166 + $0x78] sm:$0xf]
      %v206 = vld [vmem:[%s166 + $0x7c] sm:$0xf]
      %v207 = vld [vmem:[%s1] sm:$0xf]
      %v208 = vld [vmem:[%s1 + $0x4] sm:$0xf]
      %v209 = vld [vmem:[%s1 + $0x8] sm:$0xf]
      %v210 = vld [vmem:[%s1 + $0xc] sm:$0xf]
      %v211 = vld [vmem:[%s1 + $0x10] sm:$0x3]
      %v212 = vld [vmem:[%s2] sm:$0x1]
      %v214 = vlaneseq
      %v215 = vshrl.u32 %v214, 7
      %v216 = vsub.s32 0, %v215
      %v217 = vrot.slane %v212, %v216
      %v251 = vunpack.c.l.b16 %v175
      %v252 = vunpack.c.l.b16 %v176
      %v253 = vunpack.c.l.b16 %v177
      %v254 = vunpack.c.l.b16 %v178
      %v255 = vunpack.c.l.b16 %v179
      %v256 = vunpack.c.l.b16 %v180
      %v257 = vunpack.c.l.b16 %v181
      %v258 = vunpack.c.l.b16 %v182
      %v259 = vunpack.c.l.b16 %v183
      %v260 = vunpack.c.l.b16 %v184
      %v261 = vunpack.c.l.b16 %v185
      %v262 = vunpack.c.l.b16 %v186
      %v263 = vunpack.c.l.b16 %v187
      %v264 = vunpack.c.l.b16 %v188
      %v265 = vunpack.c.l.b16 %v189
      %v266 = vunpack.c.l.b16 %v190
      %v267 = vunpack.c.l.b16 %v191
      %v268 = vunpack.c.l.b16 %v192
      %v269 = vunpack.c.l.b16 %v193
      %v270 = vunpack.c.l.b16 %v194
      %v271 = vunpack.c.l.b16 %v195
      %v272 = vunpack.c.l.b16 %v196
      %v273 = vunpack.c.l.b16 %v197
      %v274 = vunpack.c.l.b16 %v198
      %v275 = vunpack.c.l.b16 %v199
      %v276 = vunpack.c.l.b16 %v200
      %v277 = vunpack.c.l.b16 %v201
      %v278 = vunpack.c.l.b16 %v202
      %v279 = vunpack.c.l.b16 %v203
      %v280 = vunpack.c.l.b16 %v204
      %v281 = vunpack.c.l.b16 %v205
      %v282 = vunpack.c.l.b16 %v206
      %v283 = vpack.c.b16 %v252, %v251
      %v284 = vpack.c.b16 %v254, %v253
      %v285 = vpack.c.b16 %v256, %v255
      %v286 = vpack.c.b16 %v258, %v257
      %v287 = vpack.c.b16 %v260, %v259
      %v288 = vpack.c.b16 %v262, %v261
      %v289 = vpack.c.b16 %v264, %v263
      %v290 = vpack.c.b16 %v266, %v265
      %v291 = vpack.c.b16 %v268, %v267
      %v292 = vpack.c.b16 %v270, %v269
      %v293 = vpack.c.b16 %v272, %v271
      %v294 = vpack.c.b16 %v274, %v273
      %v295 = vpack.c.b16 %v276, %v275
      %v296 = vpack.c.b16 %v278, %v277
      %v297 = vpack.c.b16 %v280, %v279
      %v298 = vpack.c.b16 %v282, %v281
      %v304 = vunpack.c.l.b16 %v207
      %v305 = vunpack.c.l.b16 %v208
      %v306 = vunpack.c.l.b16 %v209
      %v307 = vunpack.c.l.b16 %v210
      %v308 = vunpack.c.l.b16 %v211
      %v309 = vpack.c.b16 %v305, %v304
      %v310 = vpack.c.b16 %v307, %v306
      %v311 = vpack.c.b16 %v308, %v308
      %vm314 = vcmask 293888
      %v316 = vsel %vm314, %v283, 0
      %v319 = vsel %vm314, %v284, 0
      %v322 = vsel %vm314, %v285, 0
      %v325 = vsel %vm314, %v286, 0
      %v328 = vsel %vm314, %v287, 0
      %v331 = vsel %vm314, %v288, 0
      %v334 = vsel %vm314, %v289, 0
      %v337 = vsel %vm314, %v290, 0
      %v340 = vsel %vm314, %v291, 0
      %v343 = vsel %vm314, %v292, 0
      %v346 = vsel %vm314, %v293, 0
      %v349 = vsel %vm314, %v294, 0
      %v352 = vsel %vm314, %v295, 0
      %v355 = vsel %vm314, %v296, 0
      %v358 = vsel %vm314, %v297, 0
      %v361 = vsel %vm314, %v298, 0
      %vm363 = vcmask 1041408
      %v365 = vsel %vm363, %v311, 0
      %367 = vmatprep.subr.bf16.mxu0 0
      %368 = vmatpush1.bf16.msra.mxu0 %v309
      %369 = vmatprep.subr.bf16.mxu0 0
      %370 = vmatpush1.bf16.msra.mxu0 %v310
      %371 = vmatprep.subr.bf16.mxu0 0
      %372 = vmatpush1.bf16.msra.mxu0 %v365
      %373 = vmatprep.subr.bf16.mxu0 0
      %374 = vmatpush1.bf16.msra.mxu0 0
      %375 = vmatprep.subr.bf16.mxu0 0
      %376 = vmatpush1.bf16.msra.mxu0 0
      %377 = vmatprep.subr.bf16.mxu0 0
      %378 = vmatpush1.bf16.msra.mxu0 0
      %379 = vmatprep.subr.bf16.mxu0 0
      %380 = vmatpush1.bf16.msra.mxu0 0
      %381 = vmatprep.subr.bf16.mxu0 0
      %382 = vmatpush1.bf16.msra.mxu0 0
      %383 = vmatprep.subr.bf16.mxu0 0
      %384 = vmatpush1.bf16.msra.mxu0 0
      %385 = vmatprep.subr.bf16.mxu0 0
      %386 = vmatpush1.bf16.msra.mxu0 0
      %387 = vmatprep.subr.bf16.mxu0 0
      %388 = vmatpush1.bf16.msra.mxu0 0
      %389 = vmatprep.subr.bf16.mxu0 0
      %390 = vmatpush1.bf16.msra.mxu0 0
      %391 = vmatprep.subr.bf16.mxu0 0
      %392 = vmatpush1.bf16.msra.mxu0 0
      %393 = vmatprep.subr.bf16.mxu0 0
      %394 = vmatpush1.bf16.msra.mxu0 0
      %395 = vmatprep.subr.bf16.mxu0 0
      %396 = vmatpush1.bf16.msra.mxu0 0
      %397 = vmatprep.subr.bf16.mxu0 0
      %398 = vmatpush1.bf16.msra.mxu0 0
      %399 = vmatprep.mubr.bf16.mxu0 0
      %400 = vmatmul.mubr.bf16.gmra.mrb[0].mxu0 %v316
      %v401 = vpop.f32.mrb[0].mxu0
      %v402 = vadd.f32 %v217, %v401
      %v403 = vpop.f32.mrb[0].mxu0
      %v404 = vpop.f32.mrb[0].mxu0
      %v405 = vadd.f32 %v217, %v404
      %v406 = vpop.f32.mrb[0].mxu0
      %407 = vmatprep.mubr.bf16.mxu0 0
      %408 = vmatmul.mubr.bf16.gmra.mrb[0].mxu0 %v319
      %v409 = vpop.f32.mrb[0].mxu0
      %v410 = vadd.f32 %v217, %v409
      %v411 = vpop.f32.mrb[0].mxu0
      %v412 = vpop.f32.mrb[0].mxu0
      %v413 = vadd.f32 %v217, %v412
      %v414 = vpop.f32.mrb[0].mxu0
      %415 = vmatprep.mubr.bf16.mxu0 0
      %416 = vmatmul.mubr.bf16.gmra.mrb[0].mxu0 %v322
      %v417 = vpop.f32.mrb[0].mxu0
      %v418 = vadd.f32 %v217, %v417
      %v419 = vpop.f32.mrb[0].mxu0
      %v420 = vpop.f32.mrb[0].mxu0
      %v421 = vadd.f32 %v217, %v420
      %v422 = vpop.f32.mrb[0].mxu0
      %423 = vmatprep.mubr.bf16.mxu0 0
      %424 = vmatmul.mubr.bf16.gmra.mrb[0].mxu0 %v325
      %v425 = vpop.f32.mrb[0].mxu0
      %v426 = vadd.f32 %v217, %v425
      %v427 = vpop.f32.mrb[0].mxu0
      %v428 = vpop.f32.mrb[0].mxu0
      %v429 = vadd.f32 %v217, %v428
      %v430 = vpop.f32.mrb[0].mxu0
      %431 = vmatprep.mubr.bf16.mxu0 0
      %432 = vmatmul.mubr.bf16.gmra.mrb[0].mxu0 %v328
      %v433 = vpop.f32.mrb[0].mxu0
      %v434 = vadd.f32 %v217, %v433
      %v435 = vpop.f32.mrb[0].mxu0
      %v436 = vpop.f32.mrb[0].mxu0
      %v437 = vadd.f32 %v217, %v436
      %v438 = vpop.f32.mrb[0].mxu0
      %439 = vmatprep.mubr.bf16.mxu0 0
      %440 = vmatmul.mubr.bf16.gmra.mrb[0].mxu0 %v331
      %v441 = vpop.f32.mrb[0].mxu0
      %v442 = vadd.f32 %v217, %v441
      %v443 = vpop.f32.mrb[0].mxu0
      %v444 = vpop.f32.mrb[0].mxu0
      %v445 = vadd.f32 %v217, %v444
      %v446 = vpop.f32.mrb[0].mxu0
      %447 = vmatprep.mubr.bf16.mxu0 0
      %448 = vmatmul.mubr.bf16.gmra.mrb[0].mxu0 %v334
      %v449 = vpop.f32.mrb[0].mxu0
      %v450 = vadd.f32 %v217, %v449
      %v451 = vpop.f32.mrb[0].mxu0
      %v452 = vpop.f32.mrb[0].mxu0
      %v453 = vadd.f32 %v217, %v452
      %v454 = vpop.f32.mrb[0].mxu0
      %455 = vmatprep.mubr.bf16.mxu0 0
      %456 = vmatmul.mubr.bf16.gmra.mrb[0].mxu0 %v337
      %v457 = vpop.f32.mrb[0].mxu0
      %v458 = vadd.f32 %v217, %v457
      %v459 = vpop.f32.mrb[0].mxu0
      %v460 = vpop.f32.mrb[0].mxu0
      %v461 = vadd.f32 %v217, %v460
      %v462 = vpop.f32.mrb[0].mxu0
      %463 = vmatprep.mubr.bf16.mxu0 0
      %464 = vmatmul.mubr.bf16.gmra.mrb[0].mxu0 %v340
      %v465 = vpop.f32.mrb[0].mxu0
      %v466 = vadd.f32 %v217, %v465
      %v467 = vpop.f32.mrb[0].mxu0
      %v468 = vpop.f32.mrb[0].mxu0
      %v469 = vadd.f32 %v217, %v468
      %v470 = vpop.f32.mrb[0].mxu0
      %471 = vmatprep.mubr.bf16.mxu0 0
      %472 = vmatmul.mubr.bf16.gmra.mrb[0].mxu0 %v343
      %v473 = vpop.f32.mrb[0].mxu0
      %v474 = vadd.f32 %v217, %v473
      %v475 = vpop.f32.mrb[0].mxu0
      %v476 = vpop.f32.mrb[0].mxu0
      %v477 = vadd.f32 %v217, %v476
      %v478 = vpop.f32.mrb[0].mxu0
      %479 = vmatprep.mubr.bf16.mxu0 0
      %480 = vmatmul.mubr.bf16.gmra.mrb[0].mxu0 %v346
      %v481 = vpop.f32.mrb[0].mxu0
      %v482 = vadd.f32 %v217, %v481
      %v483 = vpop.f32.mrb[0].mxu0
      %v484 = vpop.f32.mrb[0].mxu0
      %v485 = vadd.f32 %v217, %v484
      %v486 = vpop.f32.mrb[0].mxu0
      %487 = vmatprep.mubr.bf16.mxu0 0
      %488 = vmatmul.mubr.bf16.gmra.mrb[0].mxu0 %v349
      %v489 = vpop.f32.mrb[0].mxu0
      %v490 = vadd.f32 %v217, %v489
      %v491 = vpop.f32.mrb[0].mxu0
      %v492 = vpop.f32.mrb[0].mxu0
      %v493 = vadd.f32 %v217, %v492
      %v494 = vpop.f32.mrb[0].mxu0
      %495 = vmatprep.mubr.bf16.mxu0 0
      %496 = vmatmul.mubr.bf16.gmra.mrb[0].mxu0 %v352
      %v497 = vpop.f32.mrb[0].mxu0
      %v498 = vadd.f32 %v217, %v497
      %v499 = vpop.f32.mrb[0].mxu0
      %v500 = vpop.f32.mrb[0].mxu0
      %v501 = vadd.f32 %v217, %v500
      %v502 = vpop.f32.mrb[0].mxu0
      %503 = vmatprep.mubr.bf16.mxu0 0
      %504 = vmatmul.mubr.bf16.gmra.mrb[0].mxu0 %v355
      %v505 = vpop.f32.mrb[0].mxu0
      %v506 = vadd.f32 %v217, %v505
      %v507 = vpop.f32.mrb[0].mxu0
      %v508 = vpop.f32.mrb[0].mxu0
      %v509 = vadd.f32 %v217, %v508
      %v510 = vpop.f32.mrb[0].mxu0
      %511 = vmatprep.mubr.bf16.mxu0 0
      %512 = vmatmul.mubr.bf16.gmra.mrb[0].mxu0 %v358
      %v513 = vpop.f32.mrb[0].mxu0
      %v514 = vadd.f32 %v217, %v513
      %v515 = vpop.f32.mrb[0].mxu0
      %v516 = vpop.f32.mrb[0].mxu0
      %v517 = vadd.f32 %v217, %v516
      %v518 = vpop.f32.mrb[0].mxu0
      %519 = vmatprep.mubr.bf16.mxu0 0
      %520 = vmatmul.mubr.bf16.gmra.mrb[0].mxu0 %v361
      %v521 = vpop.f32.mrb[0].mxu0
      %v522 = vadd.f32 %v217, %v521
      %v523 = vpop.f32.mrb[0].mxu0
      %v524 = vpop.f32.mrb[0].mxu0
      %v525 = vadd.f32 %v217, %v524
      %v526 = vpop.f32.mrb[0].mxu0
      %527 = vdwg.mxu0
      %528 = vst [vmem:[%s172] sm:$0xff] %v402
      %529 = vst [vmem:[%s172 + $0x8] sm:$0xff] %v405
      %530 = vst [vmem:[%s172 + $0x10] sm:$0xff] %v410
      %531 = vst [vmem:[%s172 + $0x18] sm:$0xff] %v413
      %532 = vst [vmem:[%s172 + $0x20] sm:$0xff] %v418
      %533 = vst [vmem:[%s172 + $0x28] sm:$0xff] %v421
      %534 = vst [vmem:[%s172 + $0x30] sm:$0xff] %v426
      %535 = vst [vmem:[%s172 + $0x38] sm:$0xff] %v429
      %536 = vst [vmem:[%s172 + $0x40] sm:$0xff] %v434
      %537 = vst [vmem:[%s172 + $0x48] sm:$0xff] %v437
      %538 = vst [vmem:[%s172 + $0x50] sm:$0xff] %v442
      %539 = vst [vmem:[%s172 + $0x58] sm:$0xff] %v445
      %540 = vst [vmem:[%s172 + $0x60] sm:$0xff] %v450
      %541 = vst [vmem:[%s172 + $0x68] sm:$0xff] %v453
      %542 = vst [vmem:[%s172 + $0x70] sm:$0xff] %v458
      %543 = vst [vmem:[%s172 + $0x78] sm:$0xff] %v461
      %544 = vst [vmem:[%s172 + $0x80] sm:$0xff] %v466
      %545 = vst [vmem:[%s172 + $0x88] sm:$0xff] %v469
      %546 = vst [vmem:[%s172 + $0x90] sm:$0xff] %v474
      %547 = vst [vmem:[%s172 + $0x98] sm:$0xff] %v477
      %548 = vst [vmem:[%s172 + $0xa0] sm:$0xff] %v482
      %549 = vst [vmem:[%s172 + $0xa8] sm:$0xff] %v485
      %550 = vst [vmem:[%s172 + $0xb0] sm:$0xff] %v490
      %551 = vst [vmem:[%s172 + $0xb8] sm:$0xff] %v493
      %552 = vst [vmem:[%s172 + $0xc0] sm:$0xff] %v498
      %553 = vst [vmem:[%s172 + $0xc8] sm:$0xff] %v501
      %554 = vst [vmem:[%s172 + $0xd0] sm:$0xff] %v506
      %555 = vst [vmem:[%s172 + $0xd8] sm:$0xff] %v509
      %556 = vst [vmem:[%s172 + $0xe0] sm:$0xff] %v514
      %557 = vst [vmem:[%s172 + $0xe8] sm:$0xff] %v517
      %558 = vst [vmem:[%s172 + $0xf0] sm:$0xff] %v522
      %559 = vst [vmem:[%s172 + $0xf8] sm:$0xff] %v525
      %s560 = smul.u32 32, %s14
      %p561 = scmp.lt.s32.totalorder %s560, 63
      %s562 = scalar_select %p561, %s560, 63
      %s563 = smul.addr %s562, 8
      %s564 = scalar_lea.vmem %s3, %s563
      // Predicated region
      $region33: #{a_call__.3} parent=31 // pred_check
        %p565 = pneg %p100
      $region34: #{a_call__.3} parent=31 // pred_check_branch
        %567 = sbr.rel (%p565) target = $region36
      $region35: #{a_call__.3} parent=31 // pred_region
        %s568 = smul.u32 32, %s14
      $region36: #{a_call__.3} parent=31 // pred_fallthru
        _
    $region32: #{a_call__.3} parent=5 // pred_fallthru
      _
    %p569 = scmp.le.s32.totalorder 2, %s9
    // Predicated region
    $region37: #{a_call__.3} parent=5 // pred_check
      %p570 = pneg %p569
    $region38: #{a_call__.3} parent=5 // pred_check_branch
      %572 = sbr.rel (%p570) target = $region40
    $region39: #{a_call__.3} parent=5 // pred_region
      %s573 = ssub.s32 %s9, 2
      // Predicated region
      $region41: #{a_call__.3} parent=39 // pred_check
        %p574 = pneg %p106
      $region42: #{a_call__.3} parent=39 // pred_check_branch
        %576 = sbr.rel (%p574) target = $region44
      $region43: #{a_call__.3} parent=39 // pred_region
        %s577 = smul.u32 32, %s15
        %p578 = scmp.lt.s32.totalorder %s577, 63
        %s579 = scalar_select %p578, %s577, 63
        %s580 = smul.addr %s579, 8
        %s581 = scalar_lea.vmem %s3, %s580
      $region44: #{a_call__.3} parent=39 // pred_fallthru
        _
    $region40: #{a_call__.3} parent=5 // pred_fallthru
      _
  $region6: #{a_call__.3} parent=0 // loop_footer
    %s13 = sadd.s32 1, %s9
  $region7: #{a_call__.3} parent=0 // loop_footer_branch
    %8 = sbr.rel target = $region3
  $region8: #{a_call__.3} parent=0 // loop_exit
    _

</llo_original>
